<compile_context>
chip_gen: v5e
topology: v5e:2x2
jax: 0.10.0
libtpu: 0.0.40
codegen_flags: <defaults>
</compile_context>

<pallas_src>
import functools

import jax
import jax.numpy as jnp
from jax.experimental import pallas as pl
from jax.experimental.pallas import tpu as pltpu

IN_DIM, HID_DIM, OUT_DIM = 1000, 400, 784   # logical (PyTorch) dims
PAD_HID = 512                               # hidden dim padded to x128


def _round_up(n, m):
    return ((n + m - 1) // m) * m


def decoder_kernel(x_ref, w1_ref, b1_ref, w2_ref, b2_ref, o_ref):
    # fc1 (+ bias, ReLU): cast activations to bf16 in VMEM, f32 accumulation
    # on the MXU (Mosaic masks the K=1000 tail internally; padded hidden
    # columns stay exactly 0 through bias+ReLU).
    x_bf = x_ref[...].astype(jnp.bfloat16)
    h = jnp.dot(x_bf, w1_ref[...], preferred_element_type=jnp.float32)
    h = jnp.maximum(h + b1_ref[...], 0.0)                 # (TB, 512) f32

    # fc3 (+ bias, sigmoid).
    y = jnp.dot(h.astype(jnp.bfloat16), w2_ref[...],
                preferred_element_type=jnp.float32)
    y = y + b2_ref[...]
    # sigmoid(y) == 0.5 * tanh(0.5 * y) + 0.5  -> single EUP transcendental,
    # no overflow for large |y|.
    o_ref[...] = (0.5 * jnp.tanh(0.5 * y) + 0.5).astype(o_ref.dtype)


def prepare_params(w1_t, b1, w2_t, b2):
    """One-time padding + bf16 cast of the weights (do NOT call per forward)."""
    w1_p = jnp.pad(w1_t.astype(jnp.float32),
                   ((0, 0), (0, PAD_HID - HID_DIM))).astype(jnp.bfloat16)
    b1_p = jnp.pad(b1.astype(jnp.float32),
                   (0, PAD_HID - HID_DIM)).reshape(1, PAD_HID)
    w2_p = jnp.pad(w2_t.astype(jnp.float32),
                   ((0, PAD_HID - HID_DIM), (0, 0))).astype(jnp.bfloat16)
    b2_p = b2.astype(jnp.float32).reshape(1, OUT_DIM)
    return w1_p, b1_p, w2_p, b2_p


@functools.partial(jax.jit, static_argnames=("tile_b",))
def decoder_forward(x, w1_p, b1_p, w2_p, b2_p, *, tile_b=512):
    """x: (..., 1000) -> (B, 784) float32, B = prod(leading dims)."""
    x2d = x.reshape(-1, IN_DIM)                 # == x.view(-1, 1000)
    if x2d.dtype != jnp.float32:
        x2d = x2d.astype(jnp.float32)
    B = x2d.shape[0]

    # Batch tile: multiple of 16 (bf16 sublane packing); ensure >=2 grid steps
    # when B > 16 so both v7x TensorCores get work. Tiny batches use a single
    # full-batch block (block dim == full array dim is always legal).
    if B <= 16:
        TB = B
    else:
        TB = min(_round_up(tile_b, 16), _round_up(pl.cdiv(B, 2), 16))
    grid = (pl.cdiv(B, TB),)

    cost = pl.CostEstimate(
        flops=2 * B * (IN_DIM * PAD_HID + PAD_HID * OUT_DIM),
        transcendentals=B * OUT_DIM,
        bytes_accessed=(B * IN_DIM * 4              # x (f32)
                        + IN_DIM * PAD_HID * 2      # w1 (bf16)
                        + PAD_HID * OUT_DIM * 2     # w2 (bf16)
                        + (PAD_HID + OUT_DIM) * 4   # biases (f32)
                        + B * OUT_DIM * 4),         # output (f32)
    )

    return pl.pallas_call(
        decoder_kernel,
        out_shape=jax.ShapeDtypeStruct((B, OUT_DIM), jnp.float32),
        grid=grid,
        in_specs=[
            # Activations: one batch tile per grid step (pipelined), full
            # 1000-wide last dim (legal: equals the array's last dim).
            pl.BlockSpec((TB, IN_DIM), lambda i: (i, 0)),
            # Weights / biases: constant index maps -> VMEM-resident for the
            # whole grid loop, DMA'd once.
            pl.BlockSpec((IN_DIM, PAD_HID), lambda i: (0, 0)),
            pl.BlockSpec((1, PAD_HID), lambda i: (0, 0)),
            pl.BlockSpec((PAD_HID, OUT_DIM), lambda i: (0, 0)),
            pl.BlockSpec((1, OUT_DIM), lambda i: (0, 0)),
        ],
        # Output written at its logical shape (784 == full last dim); the
        # 16-lane tail store is masked -- no post-kernel slice copy needed.
        out_specs=pl.BlockSpec((TB, OUT_DIM), lambda i: (i, 0)),
        compiler_params=pltpu.CompilerParams(
            dimension_semantics=("parallel",),      # megacore on v7x
            vmem_limit_bytes=32 << 20,              # ~15 MiB used at TB=512
        ),
        cost_estimate=cost,
    )(x2d, w1_p, b1_p, w2_p, b2_p)


def init_params(key):
    """Deterministic init mimicking nn.Linear's uniform(-1/sqrt(fan_in), ...)."""
    k1, k2, k3, k4 = jax.random.split(key, 4)
    s1 = 1.0 / jnp.sqrt(IN_DIM)
    s2 = 1.0 / jnp.sqrt(HID_DIM)
    # Stored pre-transposed: (in, out) so the kernel computes x @ W.
    w1_t = jax.random.uniform(k1, (IN_DIM, HID_DIM), jnp.float32, -s1, s1)
    b1 = jax.random.uniform(k2, (HID_DIM,), jnp.float32, -s1, s1)
    w2_t = jax.random.uniform(k3, (HID_DIM, OUT_DIM), jnp.float32, -s2, s2)
    b2 = jax.random.uniform(k4, (OUT_DIM,), jnp.float32, -s2, s2)
    return w1_t, b1, w2_t, b2


if __name__ == "__main__":
    key = jax.random.PRNGKey(0)
    k_params, k_x = jax.random.split(key)
    w1_t, b1, w2_t, b2 = init_params(k_params)

    # One-time weight prep (pad + bf16 cast) -- hoisted out of the forward.
    params = prepare_params(w1_t, b1, w2_t, b2)

    # Small example input; forward flattens to (-1, 1000).
    x = jax.random.normal(k_x, (8, IN_DIM), jnp.float32)

    out = decoder_forward(x, *params)
    out = jax.block_until_ready(out)

    # Reference check in plain JAX (same math as the PyTorch forward, f32).
    # Tolerance is loose because the kernel uses bf16 matmul operands
    # (f32 accumulation); post-sigmoid error stays well below 2e-2.
    ref = jax.nn.sigmoid(
        jnp.maximum(x.reshape(-1, IN_DIM) @ w1_t + b1, 0.0) @ w2_t + b2
    )
    assert out.shape == (8, OUT_DIM)
    assert jnp.allclose(out, ref, atol=2e-2), float(jnp.max(jnp.abs(out - ref)))

    print("KERNEL_OK")
</pallas_src>

<mosaic_0001>
module attributes {stable_mosaic.version = 11 : i64} {
  func.func @decoder_kernel(%arg0: i32, %arg1: memref<8x1000xf32, #tpu.memory_space<vmem>>, %arg2: memref<1000x512xbf16, #tpu.memory_space<vmem>>, %arg3: memref<1x512xf32, #tpu.memory_space<vmem>>, %arg4: memref<512x784xbf16, #tpu.memory_space<vmem>>, %arg5: memref<1x784xf32, #tpu.memory_space<vmem>>, %arg6: memref<8x784xf32, #tpu.memory_space<vmem>>) attributes {dimension_semantics = [#tpu.dimension_semantics<parallel>], iteration_bounds = array<i64: 1>, scalar_prefetch = 0 : i64, scratch_operands = 0 : i64, tpu.core_type = #tpu.core_type<tc>, window_params = [{transform_indices = @transform_0, window_bounds = array<i64: 8, 1000>}, {pipeline_mode = #tpu.pipeline_mode<synchronous>, transform_indices = @transform_1, window_bounds = array<i64: 1000, 512>}, {pipeline_mode = #tpu.pipeline_mode<synchronous>, transform_indices = @transform_2, window_bounds = array<i64: 1, 512>}, {pipeline_mode = #tpu.pipeline_mode<synchronous>, transform_indices = @transform_3, window_bounds = array<i64: 512, 784>}, {pipeline_mode = #tpu.pipeline_mode<synchronous>, transform_indices = @transform_4, window_bounds = array<i64: 1, 784>}, {transform_indices = @transform_5, window_bounds = array<i64: 8, 784>}]} {
    %c0 = arith.constant 0 : index
    %c0_0 = arith.constant 0 : index
    %0 = vector.load %arg1[%c0, %c0_0] : memref<8x1000xf32, #tpu.memory_space<vmem>>, vector<8x1000xf32>
    %1 = arith.truncf %0 : vector<8x1000xf32> to vector<8x1000xbf16>
    %c0_1 = arith.constant 0 : index
    %c0_2 = arith.constant 0 : index
    %2 = vector.load %arg2[%c0_1, %c0_2] : memref<1000x512xbf16, #tpu.memory_space<vmem>>, vector<1000x512xbf16>
    %cst = arith.constant dense<0.000000e+00> : vector<8x512xf32>
    %3 = tpu.matmul %1, %2, %cst {dimension_numbers = #tpu.dot_dimension_numbers<[1], [0], [0], [1], [0, 0, 1, 1], [], []>} : vector<8x1000xbf16>, vector<1000x512xbf16>, vector<8x512xf32> -> vector<8x512xf32>
    %c0_3 = arith.constant 0 : index
    %c0_4 = arith.constant 0 : index
    %4 = vector.load %arg3[%c0_3, %c0_4] : memref<1x512xf32, #tpu.memory_space<vmem>>, vector<1x512xf32>
    %5 = vector.broadcast %4 : vector<1x512xf32> to vector<8x512xf32>
    %6 = arith.addf %3, %5 : vector<8x512xf32>
    %cst_5 = arith.constant 0.000000e+00 : f32
    %7 = vector.broadcast %cst_5 : f32 to vector<8x512xf32>
    %8 = arith.maximumf %6, %7 : vector<8x512xf32>
    %9 = arith.truncf %8 : vector<8x512xf32> to vector<8x512xbf16>
    %c0_6 = arith.constant 0 : index
    %c0_7 = arith.constant 0 : index
    %10 = vector.load %arg4[%c0_6, %c0_7] : memref<512x784xbf16, #tpu.memory_space<vmem>>, vector<512x784xbf16>
    %cst_8 = arith.constant dense<0.000000e+00> : vector<8x784xf32>
    %11 = tpu.matmul %9, %10, %cst_8 {dimension_numbers = #tpu.dot_dimension_numbers<[1], [0], [0], [1], [0, 0, 1, 1], [], []>} : vector<8x512xbf16>, vector<512x784xbf16>, vector<8x784xf32> -> vector<8x784xf32>
    %c0_9 = arith.constant 0 : index
    %c0_10 = arith.constant 0 : index
    %12 = vector.load %arg5[%c0_9, %c0_10] : memref<1x784xf32, #tpu.memory_space<vmem>>, vector<1x784xf32>
    %13 = vector.broadcast %12 : vector<1x784xf32> to vector<8x784xf32>
    %14 = arith.addf %11, %13 : vector<8x784xf32>
    %cst_11 = arith.constant 5.000000e-01 : f32
    %15 = vector.broadcast %cst_11 : f32 to vector<8x784xf32>
    %16 = arith.mulf %15, %14 : vector<8x784xf32>
    %17 = math.tanh %16 : vector<8x784xf32>
    %cst_12 = arith.constant 5.000000e-01 : f32
    %18 = vector.broadcast %cst_12 : f32 to vector<8x784xf32>
    %19 = arith.mulf %18, %17 : vector<8x784xf32>
    %cst_13 = arith.constant 5.000000e-01 : f32
    %20 = vector.broadcast %cst_13 : f32 to vector<8x784xf32>
    %21 = arith.addf %19, %20 : vector<8x784xf32>
    %c0_14 = arith.constant 0 : index
    %c0_15 = arith.constant 0 : index
    %22 = vector.load %arg6[%c0_14, %c0_15] : memref<8x784xf32, #tpu.memory_space<vmem>>, vector<8x784xf32>
    tpu.vector_store %arg6[%c0_14, %c0_15], %21 {strides = array<i32>} : memref<8x784xf32, #tpu.memory_space<vmem>>, vector<8x784xf32>,
    return
  }
  func.func @transform_0(%arg0: i32) -> (i32, i32) {
    %c0_i32 = arith.constant 0 : i32
    %c0_i32_0 = arith.constant 0 : i32
    return %arg0, %c0_i32 : i32, i32
  }
  func.func @transform_1(%arg0: i32) -> (i32, i32) {
    %c0_i32 = arith.constant 0 : i32
    %c0_i32_0 = arith.constant 0 : i32
    %c0_i32_1 = arith.constant 0 : i32
    return %c0_i32, %c0_i32_0 : i32, i32
  }
  func.func @transform_2(%arg0: i32) -> (i32, i32) {
    %c0_i32 = arith.constant 0 : i32
    %c0_i32_0 = arith.constant 0 : i32
    %c0_i32_1 = arith.constant 0 : i32
    return %c0_i32, %c0_i32_0 : i32, i32
  }
  func.func @transform_3(%arg0: i32) -> (i32, i32) {
    %c0_i32 = arith.constant 0 : i32
    %c0_i32_0 = arith.constant 0 : i32
    %c0_i32_1 = arith.constant 0 : i32
    return %c0_i32, %c0_i32_0 : i32, i32
  }
  func.func @transform_4(%arg0: i32) -> (i32, i32) {
    %c0_i32 = arith.constant 0 : i32
    %c0_i32_0 = arith.constant 0 : i32
    %c0_i32_1 = arith.constant 0 : i32
    return %c0_i32, %c0_i32_0 : i32, i32
  }
  func.func @transform_5(%arg0: i32) -> (i32, i32) {
    %c0_i32 = arith.constant 0 : i32
    %c0_i32_0 = arith.constant 0 : i32
    return %arg0, %c0_i32 : i32, i32
  }
}

</mosaic_0001>

<llo_original>
// kernel: decoder_forward.1
$region0: #{decoder_forward.1}
  #allocation0 [shape = 'u32[]', space=smem, size = 0x4, offset = 0x4, fixed_abs, tag = 'smem constant byte address 0x4 - core index']
  #allocation1 [shape = 'u32[72,128]{1,0:T(1,128)}', space=vmem, size = 0x9000, scoped, tag = 'internal scratch']
  %s0 = inlined_call_operand.vmem [shape: f32[8,1000], index: 0, kind: input, shape index: {}]
  %s1 = inlined_call_operand.vmem [shape: bf16[1000,512], index: 1, kind: input, shape index: {}]
  %s2 = inlined_call_operand.vmem [shape: f32[1,512], index: 2, kind: input, shape index: {}]
  %s3 = inlined_call_operand.vmem [shape: bf16[512,784], index: 3, kind: input, shape index: {}]
  %s4 = inlined_call_operand.vmem [shape: f32[1,784], index: 4, kind: input, shape index: {}]
  %s5 = inlined_call_operand.hbm [shape: f32[8,784], index: 5, kind: output, shape index: {}]
  %s6 = sld [smem:[#allocation0]]
  $region30: #{decoder_forward.1} parent=0
    _
  %s8 = ssub.s32 1, %s6
  %s9 = scalar_select 0, %s8, %s6
  $region1: #{decoder_forward.1} parent=0
    #allocation2 [shape = 'u8[28672]{0}', space=vmem, size = 0x7000, scoped, tag = 'output window, operand 0, single buffered']
    #allocation3 [shape = 's32[1]{0}', space=sflag, size = 0x4, scoped, tag = 'scoped memory for decoder_forward.1']
    %10 = vsyncpa [#allocation3], 0
    // Predicated region
    $region2: #{decoder_forward.1} parent=1 // pred_check
      _
    $region3: #{decoder_forward.1} parent=1 // pred_check_branch
      %12 = sbr.rel (0) target = $region5
    $region4: #{decoder_forward.1} parent=1 // pred_region
      _
    $region5: #{decoder_forward.1} parent=1 // pred_fallthru
      _
    // Predicated region
    $region6: #{decoder_forward.1} parent=1 // pred_check
      _
    $region7: #{decoder_forward.1} parent=1 // pred_check_branch
      %14 = sbr.rel (0) target = $region9
    $region8: #{decoder_forward.1} parent=1 // pred_region
      _
    $region9: #{decoder_forward.1} parent=1 // pred_fallthru
      _
    // Predicated region
    $region10: #{decoder_forward.1} parent=1 // pred_check
      _
    $region11: #{decoder_forward.1} parent=1 // pred_check_branch
      %16 = sbr.rel (0) target = $region13
    $region12: #{decoder_forward.1} parent=1 // pred_region
      _
    $region13: #{decoder_forward.1} parent=1 // pred_fallthru
      _
    // Predicated region
    $region14: #{decoder_forward.1} parent=1 // pred_check
      _
    $region15: #{decoder_forward.1} parent=1 // pred_check_branch
      %18 = sbr.rel (0) target = $region17
    $region16: #{decoder_forward.1} parent=1 // pred_region
      _
    $region17: #{decoder_forward.1} parent=1 // pred_fallthru
      _
    // Predicated region
    $region18: #{decoder_forward.1} parent=1 // pred_check
      _
    $region19: #{decoder_forward.1} parent=1 // pred_check_branch
      %20 = sbr.rel (0) target = $region21
    $region20: #{decoder_forward.1} parent=1 // pred_region
      _
    $region21: #{decoder_forward.1} parent=1 // pred_fallthru
      _
    %v22 = vld [vmem:[%s0] sm:$0xff]
    %v23 = vld [vmem:[%s0 + $0x8] sm:$0xff]
    %v24 = vld [vmem:[%s0 + $0x10] sm:$0xff]
    %v25 = vld [vmem:[%s0 + $0x18] sm:$0xff]
    %v26 = vld [vmem:[%s0 + $0x20] sm:$0xff]
    %v27 = vld [vmem:[%s0 + $0x28] sm:$0xff]
    %v28 = vld [vmem:[%s0 + $0x30] sm:$0xff]
    %v29 = vld [vmem:[%s0 + $0x38] sm:$0xff]
    %v30 = vpack.c.bf16 %v22, %v22
    %v31 = vpack.c.bf16 %v23, %v23
    %v32 = vpack.c.bf16 %v24, %v24
    %v33 = vpack.c.bf16 %v25, %v25
    %v34 = vpack.c.bf16 %v26, %v26
    %v35 = vpack.c.bf16 %v27, %v27
    %v36 = vpack.c.bf16 %v28, %v28
    %v37 = vpack.c.bf16 %v29, %v29
    %v38 = vld [vmem:[%s1] sm:$0xff]
    %v39 = vld [vmem:[%s1 + $0x8] sm:$0xff]
    %v40 = vld [vmem:[%s1 + $0x10] sm:$0xff]
    %v41 = vld [vmem:[%s1 + $0x18] sm:$0xff]
    %v42 = vld [vmem:[%s1 + $0x20] sm:$0xff]
    %v43 = vld [vmem:[%s1 + $0x28] sm:$0xff]
    %v44 = vld [vmem:[%s1 + $0x30] sm:$0xff]
    %v45 = vld [vmem:[%s1 + $0x38] sm:$0xff]
    %v46 = vld [vmem:[%s1 + $0x40] sm:$0xff]
    %v47 = vld [vmem:[%s1 + $0x48] sm:$0xff]
    %v48 = vld [vmem:[%s1 + $0x50] sm:$0xff]
    %v49 = vld [vmem:[%s1 + $0x58] sm:$0xff]
    %v50 = vld [vmem:[%s1 + $0x60] sm:$0xff]
    %v51 = vld [vmem:[%s1 + $0x68] sm:$0xff]
    %v52 = vld [vmem:[%s1 + $0x70] sm:$0xff]
    %v53 = vld [vmem:[%s1 + $0x78] sm:$0xff]
    %v54 = vld [vmem:[%s1 + $0x80] sm:$0xff]
    %v55 = vld [vmem:[%s1 + $0x88] sm:$0xff]
    %v56 = vld [vmem:[%s1 + $0x90] sm:$0xff]
    %v57 = vld [vmem:[%s1 + $0x98] sm:$0xff]
    %v58 = vld [vmem:[%s1 + $0xa0] sm:$0xff]
    %v59 = vld [vmem:[%s1 + $0xa8] sm:$0xff]
    %v60 = vld [vmem:[%s1 + $0xb0] sm:$0xff]
    %v61 = vld [vmem:[%s1 + $0xb8] sm:$0xff]
    %v62 = vld [vmem:[%s1 + $0xc0] sm:$0xff]
    %v63 = vld [vmem:[%s1 + $0xc8] sm:$0xff]
    %v64 = vld [vmem:[%s1 + $0xd0] sm:$0xff]
    %v65 = vld [vmem:[%s1 + $0xd8] sm:$0xff]
    %v66 = vld [vmem:[%s1 + $0xe0] sm:$0xff]
    %v67 = vld [vmem:[%s1 + $0xe8] sm:$0xff]
    %v68 = vld [vmem:[%s1 + $0xf0] sm:$0xff]
    %v69 = vld [vmem:[%s1 + $0xf8] sm:$0xff]
    %v70 = vld [vmem:[%s1 + $0x100] sm:$0xff]
    %v71 = vld [vmem:[%s1 + $0x108] sm:$0xff]
    %v72 = vld [vmem:[%s1 + $0x110] sm:$0xff]
    %v73 = vld [vmem:[%s1 + $0x118] sm:$0xff]
    %v74 = vld [vmem:[%s1 + $0x120] sm:$0xff]
    %v75 = vld [vmem:[%s1 + $0x128] sm:$0xff]
    %v76 = vld [vmem:[%s1 + $0x130] sm:$0xff]
    %v77 = vld [vmem:[%s1 + $0x138] sm:$0xff]
    %v78 = vld [vmem:[%s1 + $0x140] sm:$0xff]
    %v79 = vld [vmem:[%s1 + $0x148] sm:$0xff]
    %v80 = vld [vmem:[%s1 + $0x150] sm:$0xff]
    %v81 = vld [vmem:[%s1 + $0x158] sm:$0xff]
    %v82 = vld [vmem:[%s1 + $0x160] sm:$0xff]
    %v83 = vld [vmem:[%s1 + $0x168] sm:$0xff]
    %v84 = vld [vmem:[%s1 + $0x170] sm:$0xff]
    %v85 = vld [vmem:[%s1 + $0x178] sm:$0xff]
    %v86 = vld [vmem:[%s1 + $0x180] sm:$0xff]
    %v87 = vld [vmem:[%s1 + $0x188] sm:$0xff]
    %v88 = vld [vmem:[%s1 + $0x190] sm:$0xff]
    %v89 = vld [vmem:[%s1 + $0x198] sm:$0xff]
    %v90 = vld [vmem:[%s1 + $0x1a0] sm:$0xff]
    %v91 = vld [vmem:[%s1 + $0x1a8] sm:$0xff]
    %v92 = vld [vmem:[%s1 + $0x1b0] sm:$0xff]
    %v93 = vld [vmem:[%s1 + $0x1b8] sm:$0xff]
    %v94 = vld [vmem:[%s1 + $0x1c0] sm:$0xff]
    %v95 = vld [vmem:[%s1 + $0x1c8] sm:$0xff]
    %v96 = vld [vmem:[%s1 + $0x1d0] sm:$0xff]
    %v97 = vld [vmem:[%s1 + $0x1d8] sm:$0xff]
    %v98 = vld [vmem:[%s1 + $0x1e0] sm:$0xff]
    %v99 = vld [vmem:[%s1 + $0x1e8] sm:$0xff]
    %v100 = vld [vmem:[%s1 + $0x1f0] sm:$0xff]
    %v101 = vld [vmem:[%s1 + $0x1f8] sm:$0xff]
    %v102 = vld [vmem:[%s1 + $0x200] sm:$0xff]
    %v103 = vld [vmem:[%s1 + $0x208] sm:$0xff]
    %v104 = vld [vmem:[%s1 + $0x210] sm:$0xff]
    %v105 = vld [vmem:[%s1 + $0x218] sm:$0xff]
    %v106 = vld [vmem:[%s1 + $0x220] sm:$0xff]
    %v107 = vld [vmem:[%s1 + $0x228] sm:$0xff]
    %v108 = vld [vmem:[%s1 + $0x230] sm:$0xff]
    %v109 = vld [vmem:[%s1 + $0x238] sm:$0xff]
    %v110 = vld [vmem:[%s1 + $0x240] sm:$0xff]
    %v111 = vld [vmem:[%s1 + $0x248] sm:$0xff]
    %v112 = vld [vmem:[%s1 + $0x250] sm:$0xff]
    %v113 = vld [vmem:[%s1 + $0x258] sm:$0xff]
    %v114 = vld [vmem:[%s1 + $0x260] sm:$0xff]
    %v115 = vld [vmem:[%s1 + $0x268] sm:$0xff]
    %v116 = vld [vmem:[%s1 + $0x270] sm:$0xff]
    %v117 = vld [vmem:[%s1 + $0x278] sm:$0xff]
    %v118 = vld [vmem:[%s1 + $0x280] sm:$0xff]
    %v119 = vld [vmem:[%s1 + $0x288] sm:$0xff]
    %v120 = vld [vmem:[%s1 + $0x290] sm:$0xff]
    %v121 = vld [vmem:[%s1 + $0x298] sm:$0xff]
    %v122 = vld [vmem:[%s1 + $0x2a0] sm:$0xff]
    %v123 = vld [vmem:[%s1 + $0x2a8] sm:$0xff]
    %v124 = vld [vmem:[%s1 + $0x2b0] sm:$0xff]
    %v125 = vld [vmem:[%s1 + $0x2b8] sm:$0xff]
    %v126 = vld [vmem:[%s1 + $0x2c0] sm:$0xff]
    %v127 = vld [vmem:[%s1 + $0x2c8] sm:$0xff]
    %v128 = vld [vmem:[%s1 + $0x2d0] sm:$0xff]
    %v129 = vld [vmem:[%s1 + $0x2d8] sm:$0xff]
    %v130 = vld [vmem:[%s1 + $0x2e0] sm:$0xff]
    %v131 = vld [vmem:[%s1 + $0x2e8] sm:$0xff]
    %v132 = vld [vmem:[%s1 + $0x2f0] sm:$0xff]
    %v133 = vld [vmem:[%s1 + $0x2f8] sm:$0xff]
    %v134 = vld [vmem:[%s1 + $0x300] sm:$0xff]
    %v135 = vld [vmem:[%s1 + $0x308] sm:$0xff]
    %v136 = vld [vmem:[%s1 + $0x310] sm:$0xff]
    %v137 = vld [vmem:[%s1 + $0x318] sm:$0xff]
    %v138 = vld [vmem:[%s1 + $0x320] sm:$0xff]
    %v139 = vld [vmem:[%s1 + $0x328] sm:$0xff]
    %v140 = vld [vmem:[%s1 + $0x330] sm:$0xff]
    %v141 = vld [vmem:[%s1 + $0x338] sm:$0xff]
    %v142 = vld [vmem:[%s1 + $0x340] sm:$0xff]
    %v143 = vld [vmem:[%s1 + $0x348] sm:$0xff]
    %v144 = vld [vmem:[%s1 + $0x350] sm:$0xff]
    %v145 = vld [vmem:[%s1 + $0x358] sm:$0xff]
    %v146 = vld [vmem:[%s1 + $0x360] sm:$0xff]
    %v147 = vld [vmem:[%s1 + $0x368] sm:$0xff]
    %v148 = vld [vmem:[%s1 + $0x370] sm:$0xff]
    %v149 = vld [vmem:[%s1 + $0x378] sm:$0xff]
    %v150 = vld [vmem:[%s1 + $0x380] sm:$0xff]
    %v151 = vld [vmem:[%s1 + $0x388] sm:$0xff]
    %v152 = vld [vmem:[%s1 + $0x390] sm:$0xff]
    %v153 = vld [vmem:[%s1 + $0x398] sm:$0xff]
    %v154 = vld [vmem:[%s1 + $0x3a0] sm:$0xff]
    %v155 = vld [vmem:[%s1 + $0x3a8] sm:$0xff]
    %v156 = vld [vmem:[%s1 + $0x3b0] sm:$0xff]
    %v157 = vld [vmem:[%s1 + $0x3b8] sm:$0xff]
    %v158 = vld [vmem:[%s1 + $0x3c0] sm:$0xff]
    %v159 = vld [vmem:[%s1 + $0x3c8] sm:$0xff]
    %v160 = vld [vmem:[%s1 + $0x3d0] sm:$0xff]
    %v161 = vld [vmem:[%s1 + $0x3d8] sm:$0xff]
    %v162 = vld [vmem:[%s1 + $0x3e0] sm:$0xff]
    %v163 = vld [vmem:[%s1 + $0x3e8] sm:$0xff]
    %v164 = vld [vmem:[%s1 + $0x3f0] sm:$0xff]
    %v165 = vld [vmem:[%s1 + $0x3f8] sm:$0xff]
    %v166 = vld [vmem:[%s1 + $0x400] sm:$0xff]
    %v167 = vld [vmem:[%s1 + $0x408] sm:$0xff]
    %v168 = vld [vmem:[%s1 + $0x410] sm:$0xff]
    %v169 = vld [vmem:[%s1 + $0x418] sm:$0xff]
    %v170 = vld [vmem:[%s1 + $0x420] sm:$0xff]
    %v171 = vld [vmem:[%s1 + $0x428] sm:$0xff]
    %v172 = vld [vmem:[%s1 + $0x430] sm:$0xff]
    %v173 = vld [vmem:[%s1 + $0x438] sm:$0xff]
    %v174 = vld [vmem:[%s1 + $0x440] sm:$0xff]
    %v175 = vld [vmem:[%s1 + $0x448] sm:$0xff]
    %v176 = vld [vmem:[%s1 + $0x450] sm:$0xff]
    %v177 = vld [vmem:[%s1 + $0x458] sm:$0xff]
    %v178 = vld [vmem:[%s1 + $0x460] sm:$0xff]
    %v179 = vld [vmem:[%s1 + $0x468] sm:$0xff]
    %v180 = vld [vmem:[%s1 + $0x470] sm:$0xff]
    %v181 = vld [vmem:[%s1 + $0x478] sm:$0xff]
    %v182 = vld [vmem:[%s1 + $0x480] sm:$0xff]
    %v183 = vld [vmem:[%s1 + $0x488] sm:$0xff]
    %v184 = vld [vmem:[%s1 + $0x490] sm:$0xff]
    %v185 = vld [vmem:[%s1 + $0x498] sm:$0xff]
    %v186 = vld [vmem:[%s1 + $0x4a0] sm:$0xff]
    %v187 = vld [vmem:[%s1 + $0x4a8] sm:$0xff]
    %v188 = vld [vmem:[%s1 + $0x4b0] sm:$0xff]
    %v189 = vld [vmem:[%s1 + $0x4b8] sm:$0xff]
    %v190 = vld [vmem:[%s1 + $0x4c0] sm:$0xff]
    %v191 = vld [vmem:[%s1 + $0x4c8] sm:$0xff]
    %v192 = vld [vmem:[%s1 + $0x4d0] sm:$0xff]
    %v193 = vld [vmem:[%s1 + $0x4d8] sm:$0xff]
    %v194 = vld [vmem:[%s1 + $0x4e0] sm:$0xff]
    %v195 = vld [vmem:[%s1 + $0x4e8] sm:$0xff]
    %v196 = vld [vmem:[%s1 + $0x4f0] sm:$0xff]
    %v197 = vld [vmem:[%s1 + $0x4f8] sm:$0xff]
    %v198 = vld [vmem:[%s1 + $0x500] sm:$0xff]
    %v199 = vld [vmem:[%s1 + $0x508] sm:$0xff]
    %v200 = vld [vmem:[%s1 + $0x510] sm:$0xff]
    %v201 = vld [vmem:[%s1 + $0x518] sm:$0xff]
    %v202 = vld [vmem:[%s1 + $0x520] sm:$0xff]
    %v203 = vld [vmem:[%s1 + $0x528] sm:$0xff]
    %v204 = vld [vmem:[%s1 + $0x530] sm:$0xff]
    %v205 = vld [vmem:[%s1 + $0x538] sm:$0xff]
    %v206 = vld [vmem:[%s1 + $0x540] sm:$0xff]
    %v207 = vld [vmem:[%s1 + $0x548] sm:$0xff]
    %v208 = vld [vmem:[%s1 + $0x550] sm:$0xff]
    %v209 = vld [vmem:[%s1 + $0x558] sm:$0xff]
    %v210 = vld [vmem:[%s1 + $0x560] sm:$0xff]
    %v211 = vld [vmem:[%s1 + $0x568] sm:$0xff]
    %v212 = vld [vmem:[%s1 + $0x570] sm:$0xff]
    %v213 = vld [vmem:[%s1 + $0x578] sm:$0xff]
    %v214 = vld [vmem:[%s1 + $0x580] sm:$0xff]
    %v215 = vld [vmem:[%s1 + $0x588] sm:$0xff]
    %v216 = vld [vmem:[%s1 + $0x590] sm:$0xff]
    %v217 = vld [vmem:[%s1 + $0x598] sm:$0xff]
    %v218 = vld [vmem:[%s1 + $0x5a0] sm:$0xff]
    %v219 = vld [vmem:[%s1 + $0x5a8] sm:$0xff]
    %v220 = vld [vmem:[%s1 + $0x5b0] sm:$0xff]
    %v221 = vld [vmem:[%s1 + $0x5b8] sm:$0xff]
    %v222 = vld [vmem:[%s1 + $0x5c0] sm:$0xff]
    %v223 = vld [vmem:[%s1 + $0x5c8] sm:$0xff]
    %v224 = vld [vmem:[%s1 + $0x5d0] sm:$0xff]
    %v225 = vld [vmem:[%s1 + $0x5d8] sm:$0xff]
    %v226 = vld [vmem:[%s1 + $0x5e0] sm:$0xff]
    %v227 = vld [vmem:[%s1 + $0x5e8] sm:$0xff]
    %v228 = vld [vmem:[%s1 + $0x5f0] sm:$0xff]
    %v229 = vld [vmem:[%s1 + $0x5f8] sm:$0xff]
    %v230 = vld [vmem:[%s1 + $0x600] sm:$0xff]
    %v231 = vld [vmem:[%s1 + $0x608] sm:$0xff]
    %v232 = vld [vmem:[%s1 + $0x610] sm:$0xff]
    %v233 = vld [vmem:[%s1 + $0x618] sm:$0xff]
    %v234 = vld [vmem:[%s1 + $0x620] sm:$0xff]
    %v235 = vld [vmem:[%s1 + $0x628] sm:$0xff]
    %v236 = vld [vmem:[%s1 + $0x630] sm:$0xff]
    %v237 = vld [vmem:[%s1 + $0x638] sm:$0xff]
    %v238 = vld [vmem:[%s1 + $0x640] sm:$0xff]
    %v239 = vld [vmem:[%s1 + $0x648] sm:$0xff]
    %v240 = vld [vmem:[%s1 + $0x650] sm:$0xff]
    %v241 = vld [vmem:[%s1 + $0x658] sm:$0xff]
    %v242 = vld [vmem:[%s1 + $0x660] sm:$0xff]
    %v243 = vld [vmem:[%s1 + $0x668] sm:$0xff]
    %v244 = vld [vmem:[%s1 + $0x670] sm:$0xff]
    %v245 = vld [vmem:[%s1 + $0x678] sm:$0xff]
    %v246 = vld [vmem:[%s1 + $0x680] sm:$0xff]
    %v247 = vld [vmem:[%s1 + $0x688] sm:$0xff]
    %v248 = vld [vmem:[%s1 + $0x690] sm:$0xff]
    %v249 = vld [vmem:[%s1 + $0x698] sm:$0xff]
    %v250 = vld [vmem:[%s1 + $0x6a0] sm:$0xff]
    %v251 = vld [vmem:[%s1 + $0x6a8] sm:$0xff]
    %v252 = vld [vmem:[%s1 + $0x6b0] sm:$0xff]
    %v253 = vld [vmem:[%s1 + $0x6b8] sm:$0xff]
    %v254 = vld [vmem:[%s1 + $0x6c0] sm:$0xff]
    %v255 = vld [vmem:[%s1 + $0x6c8] sm:$0xff]
    %v256 = vld [vmem:[%s1 + $0x6d0] sm:$0xff]
    %v257 = vld [vmem:[%s1 + $0x6d8] sm:$0xff]
    %v258 = vld [vmem:[%s1 + $0x6e0] sm:$0xff]
    %v259 = vld [vmem:[%s1 + $0x6e8] sm:$0xff]
    %v260 = vld [vmem:[%s1 + $0x6f0] sm:$0xff]
    %v261 = vld [vmem:[%s1 + $0x6f8] sm:$0xff]
    %v262 = vld [vmem:[%s1 + $0x700] sm:$0xff]
    %v263 = vld [vmem:[%s1 + $0x708] sm:$0xff]
    %v264 = vld [vmem:[%s1 + $0x710] sm:$0xff]
    %v265 = vld [vmem:[%s1 + $0x718] sm:$0xff]
    %v266 = vld [vmem:[%s1 + $0x720] sm:$0xff]
    %v267 = vld [vmem:[%s1 + $0x728] sm:$0xff]
    %v268 = vld [vmem:[%s1 + $0x730] sm:$0xff]
    %v269 = vld [vmem:[%s1 + $0x738] sm:$0xff]
    %v270 = vld [vmem:[%s1 + $0x740] sm:$0xff]
    %v271 = vld [vmem:[%s1 + $0x748] sm:$0xff]
    %v272 = vld [vmem:[%s1 + $0x750] sm:$0xff]
    %v273 = vld [vmem:[%s1 + $0x758] sm:$0xff]
    %v274 = vld [vmem:[%s1 + $0x760] sm:$0xff]
    %v275 = vld [vmem:[%s1 + $0x768] sm:$0xff]
    %v276 = vld [vmem:[%s1 + $0x770] sm:$0xff]
    %v277 = vld [vmem:[%s1 + $0x778] sm:$0xff]
    %v278 = vld [vmem:[%s1 + $0x780] sm:$0xff]
    %v279 = vld [vmem:[%s1 + $0x788] sm:$0xff]
    %v280 = vld [vmem:[%s1 + $0x790] sm:$0xff]
    %v281 = vld [vmem:[%s1 + $0x798] sm:$0xff]
    %v282 = vld [vmem:[%s1 + $0x7a0] sm:$0xff]
    %v283 = vld [vmem:[%s1 + $0x7a8] sm:$0xff]
    %v284 = vld [vmem:[%s1 + $0x7b0] sm:$0xff]
    %v285 = vld [vmem:[%s1 + $0x7b8] sm:$0xff]
    %v286 = vld [vmem:[%s1 + $0x7c0] sm:$0xff]
    %v287 = vld [vmem:[%s1 + $0x7c8] sm:$0xff]
    %v288 = vld [vmem:[%s2] sm:$0xf]
    %v290 = vperm.slane %v288, 0
    %v291 = vperm.slane %v288, 1
    %v292 = vperm.slane %v288, 2
    %v293 = vperm.slane %v288, 3
    %v548 = vunpack.c.l.b16 %v38
    %v549 = vunpack.c.h.b16 %v38
    %v550 = vunpack.c.l.b16 %v39
    %v551 = vunpack.c.h.b16 %v39
    %v552 = vunpack.c.l.b16 %v40
    %v553 = vunpack.c.h.b16 %v40
    %v554 = vunpack.c.l.b16 %v41
    %v555 = vunpack.c.h.b16 %v41
    %v556 = vunpack.c.l.b16 %v42
    %v557 = vunpack.c.h.b16 %v42
    %v558 = vunpack.c.l.b16 %v43
    %v559 = vunpack.c.h.b16 %v43
    %v560 = vunpack.c.l.b16 %v44
    %v561 = vunpack.c.h.b16 %v44
    %v562 = vunpack.c.l.b16 %v45
    %v563 = vunpack.c.h.b16 %v45
    %v564 = vunpack.c.l.b16 %v46
    %v565 = vunpack.c.h.b16 %v46
    %v566 = vunpack.c.l.b16 %v47
    %v567 = vunpack.c.h.b16 %v47
    %v568 = vunpack.c.l.b16 %v48
    %v569 = vunpack.c.h.b16 %v48
    %v570 = vunpack.c.l.b16 %v49
    %v571 = vunpack.c.h.b16 %v49
    %v572 = vunpack.c.l.b16 %v50
    %v573 = vunpack.c.h.b16 %v50
    %v574 = vunpack.c.l.b16 %v51
    %v575 = vunpack.c.h.b16 %v51
    %v576 = vunpack.c.l.b16 %v52
    %v577 = vunpack.c.h.b16 %v52
    %v578 = vunpack.c.l.b16 %v53
    %v579 = vunpack.c.h.b16 %v53
    %v580 = vunpack.c.l.b16 %v54
    %v581 = vunpack.c.h.b16 %v54
    %v582 = vunpack.c.l.b16 %v55
    %v583 = vunpack.c.h.b16 %v55
    %v584 = vunpack.c.l.b16 %v56
    %v585 = vunpack.c.h.b16 %v56
    %v586 = vunpack.c.l.b16 %v57
    %v587 = vunpack.c.h.b16 %v57
    %v588 = vunpack.c.l.b16 %v58
    %v589 = vunpack.c.h.b16 %v58
    %v590 = vunpack.c.l.b16 %v59
    %v591 = vunpack.c.h.b16 %v59
    %v592 = vunpack.c.l.b16 %v60
    %v593 = vunpack.c.h.b16 %v60
    %v594 = vunpack.c.l.b16 %v61
    %v595 = vunpack.c.h.b16 %v61
    %v596 = vunpack.c.l.b16 %v62
    %v597 = vunpack.c.h.b16 %v62
    %v598 = vunpack.c.l.b16 %v63
    %v599 = vunpack.c.h.b16 %v63
    %v600 = vunpack.c.l.b16 %v64
    %v601 = vunpack.c.h.b16 %v64
    %v602 = vunpack.c.l.b16 %v65
    %v603 = vunpack.c.h.b16 %v65
    %v604 = vunpack.c.l.b16 %v66
    %v605 = vunpack.c.h.b16 %v66
    %v606 = vunpack.c.l.b16 %v67
    %v607 = vunpack.c.h.b16 %v67
    %v608 = vunpack.c.l.b16 %v68
    %v609 = vunpack.c.h.b16 %v68
    %v610 = vunpack.c.l.b16 %v69
    %v611 = vunpack.c.h.b16 %v69
    %v612 = vunpack.c.l.b16 %v70
    %v613 = vunpack.c.h.b16 %v70
    %v614 = vunpack.c.l.b16 %v71
    %v615 = vunpack.c.h.b16 %v71
    %v616 = vunpack.c.l.b16 %v72
    %v617 = vunpack.c.h.b16 %v72
    %v618 = vunpack.c.l.b16 %v73
    %v619 = vunpack.c.h.b16 %v73
    %v620 = vunpack.c.l.b16 %v74
    %v621 = vunpack.c.h.b16 %v74
    %v622 = vunpack.c.l.b16 %v75
    %v623 = vunpack.c.h.b16 %v75
    %v624 = vunpack.c.l.b16 %v76
    %v625 = vunpack.c.h.b16 %v76
    %v626 = vunpack.c.l.b16 %v77
    %v627 = vunpack.c.h.b16 %v77
    %v628 = vunpack.c.l.b16 %v78
    %v629 = vunpack.c.h.b16 %v78
    %v630 = vunpack.c.l.b16 %v79
    %v631 = vunpack.c.h.b16 %v79
    %v632 = vunpack.c.l.b16 %v80
    %v633 = vunpack.c.h.b16 %v80
    %v634 = vunpack.c.l.b16 %v81
    %v635 = vunpack.c.h.b16 %v81
    %v636 = vunpack.c.l.b16 %v82
    %v637 = vunpack.c.h.b16 %v82
    %v638 = vunpack.c.l.b16 %v83
    %v639 = vunpack.c.h.b16 %v83
    %v640 = vunpack.c.l.b16 %v84
    %v641 = vunpack.c.h.b16 %v84
    %v642 = vunpack.c.l.b16 %v85
    %v643 = vunpack.c.h.b16 %v85
    %v644 = vunpack.c.l.b16 %v86
    %v645 = vunpack.c.h.b16 %v86
    %v646 = vunpack.c.l.b16 %v87
    %v647 = vunpack.c.h.b16 %v87
    %v648 = vunpack.c.l.b16 %v88
    %v649 = vunpack.c.h.b16 %v88
    %v650 = vunpack.c.l.b16 %v89
    %v651 = vunpack.c.h.b16 %v89
    %v652 = vunpack.c.l.b16 %v90
    %v653 = vunpack.c.h.b16 %v90
    %v654 = vunpack.c.l.b16 %v91
    %v655 = vunpack.c.h.b16 %v91
    %v656 = vunpack.c.l.b16 %v92
    %v657 = vunpack.c.h.b16 %v92
    %v658 = vunpack.c.l.b16 %v93
    %v659 = vunpack.c.h.b16 %v93
    %v660 = vunpack.c.l.b16 %v94
    %v661 = vunpack.c.h.b16 %v94
    %v662 = vunpack.c.l.b16 %v95
    %v663 = vunpack.c.h.b16 %v95
    %v664 = vunpack.c.l.b16 %v96
    %v665 = vunpack.c.h.b16 %v96
    %v666 = vunpack.c.l.b16 %v97
    %v667 = vunpack.c.h.b16 %v97
    %v668 = vunpack.c.l.b16 %v98
    %v669 = vunpack.c.h.b16 %v98
    %v670 = vunpack.c.l.b16 %v99
    %v671 = vunpack.c.h.b16 %v99
    %v672 = vunpack.c.l.b16 %v100
    %v673 = vunpack.c.h.b16 %v100
    %v674 = vunpack.c.l.b16 %v101
    %v675 = vunpack.c.h.b16 %v101
    %v676 = vunpack.c.l.b16 %v102
    %v677 = vunpack.c.h.b16 %v102
    %v678 = vunpack.c.l.b16 %v103
    %v679 = vunpack.c.h.b16 %v103
    %v680 = vunpack.c.l.b16 %v104
    %v681 = vunpack.c.h.b16 %v104
    %v682 = vunpack.c.l.b16 %v105
    %v683 = vunpack.c.h.b16 %v105
    %v684 = vunpack.c.l.b16 %v106
    %v685 = vunpack.c.h.b16 %v106
    %v686 = vunpack.c.l.b16 %v107
    %v687 = vunpack.c.h.b16 %v107
    %v688 = vunpack.c.l.b16 %v108
    %v689 = vunpack.c.h.b16 %v108
    %v690 = vunpack.c.l.b16 %v109
    %v691 = vunpack.c.h.b16 %v109
    %v692 = vunpack.c.l.b16 %v110
    %v693 = vunpack.c.h.b16 %v110
    %v694 = vunpack.c.l.b16 %v111
    %v695 = vunpack.c.h.b16 %v111
    %v696 = vunpack.c.l.b16 %v112
    %v697 = vunpack.c.h.b16 %v112
    %v698 = vunpack.c.l.b16 %v113
    %v699 = vunpack.c.h.b16 %v113
    %v700 = vunpack.c.l.b16 %v114
    %v701 = vunpack.c.h.b16 %v114
    %v702 = vunpack.c.l.b16 %v115
    %v703 = vunpack.c.h.b16 %v115
    %v704 = vunpack.c.l.b16 %v116
    %v705 = vunpack.c.h.b16 %v116
    %v706 = vunpack.c.l.b16 %v117
    %v707 = vunpack.c.h.b16 %v117
    %v708 = vunpack.c.l.b16 %v118
    %v709 = vunpack.c.h.b16 %v118
    %v710 = vunpack.c.l.b16 %v119
    %v711 = vunpack.c.h.b16 %v119
    %v712 = vunpack.c.l.b16 %v120
    %v713 = vunpack.c.h.b16 %v120
    %v714 = vunpack.c.l.b16 %v121
    %v715 = vunpack.c.h.b16 %v121
    %v716 = vunpack.c.l.b16 %v122
    %v717 = vunpack.c.h.b16 %v122
    %v718 = vunpack.c.l.b16 %v123
    %v719 = vunpack.c.h.b16 %v123
    %v720 = vunpack.c.l.b16 %v124
    %v721 = vunpack.c.h.b16 %v124
    %v722 = vunpack.c.l.b16 %v125
    %v723 = vunpack.c.h.b16 %v125
    %v724 = vunpack.c.l.b16 %v126
    %v725 = vunpack.c.h.b16 %v126
    %v726 = vunpack.c.l.b16 %v127
    %v727 = vunpack.c.h.b16 %v127
    %v728 = vunpack.c.l.b16 %v128
    %v729 = vunpack.c.h.b16 %v128
    %v730 = vunpack.c.l.b16 %v129
    %v731 = vunpack.c.h.b16 %v129
    %v732 = vunpack.c.l.b16 %v130
    %v733 = vunpack.c.h.b16 %v130
    %v734 = vunpack.c.l.b16 %v131
    %v735 = vunpack.c.h.b16 %v131
    %v736 = vunpack.c.l.b16 %v132
    %v737 = vunpack.c.h.b16 %v132
    %v738 = vunpack.c.l.b16 %v133
    %v739 = vunpack.c.h.b16 %v133
    %v740 = vunpack.c.l.b16 %v134
    %v741 = vunpack.c.h.b16 %v134
    %v742 = vunpack.c.l.b16 %v135
    %v743 = vunpack.c.h.b16 %v135
    %v744 = vunpack.c.l.b16 %v136
    %v745 = vunpack.c.h.b16 %v136
    %v746 = vunpack.c.l.b16 %v137
    %v747 = vunpack.c.h.b16 %v137
    %v748 = vunpack.c.l.b16 %v138
    %v749 = vunpack.c.h.b16 %v138
    %v750 = vunpack.c.l.b16 %v139
    %v751 = vunpack.c.h.b16 %v139
    %v752 = vunpack.c.l.b16 %v140
    %v753 = vunpack.c.h.b16 %v140
    %v754 = vunpack.c.l.b16 %v141
    %v755 = vunpack.c.h.b16 %v141
    %v756 = vunpack.c.l.b16 %v142
    %v757 = vunpack.c.h.b16 %v142
    %v758 = vunpack.c.l.b16 %v143
    %v759 = vunpack.c.h.b16 %v143
    %v760 = vunpack.c.l.b16 %v144
    %v761 = vunpack.c.h.b16 %v144
    %v762 = vunpack.c.l.b16 %v145
    %v763 = vunpack.c.h.b16 %v145
    %v764 = vunpack.c.l.b16 %v146
    %v765 = vunpack.c.h.b16 %v146
    %v766 = vunpack.c.l.b16 %v147
    %v767 = vunpack.c.h.b16 %v147
    %v768 = vunpack.c.l.b16 %v148
    %v769 = vunpack.c.h.b16 %v148
    %v770 = vunpack.c.l.b16 %v149
    %v771 = vunpack.c.h.b16 %v149
    %v772 = vunpack.c.l.b16 %v150
    %v773 = vunpack.c.h.b16 %v150
    %v774 = vunpack.c.l.b16 %v151
    %v775 = vunpack.c.h.b16 %v151
    %v776 = vunpack.c.l.b16 %v152
    %v777 = vunpack.c.h.b16 %v152
    %v778 = vunpack.c.l.b16 %v153
    %v779 = vunpack.c.h.b16 %v153
    %v780 = vunpack.c.l.b16 %v154
    %v781 = vunpack.c.h.b16 %v154
    %v782 = vunpack.c.l.b16 %v155
    %v783 = vunpack.c.h.b16 %v155
    %v784 = vunpack.c.l.b16 %v156
    %v785 = vunpack.c.h.b16 %v156
    %v786 = vunpack.c.l.b16 %v157
    %v787 = vunpack.c.h.b16 %v157
    %v788 = vunpack.c.l.b16 %v158
    %v789 = vunpack.c.h.b16 %v158
    %v790 = vunpack.c.l.b16 %v159
    %v791 = vunpack.c.h.b16 %v159
    %v792 = vunpack.c.l.b16 %v160
    %v793 = vunpack.c.h.b16 %v160
    %v794 = vunpack.c.l.b16 %v161
    %v795 = vunpack.c.h.b16 %v161
    %v796 = vunpack.c.l.b16 %v162
    %v797 = vunpack.c.h.b16 %v162
    %v798 = vunpack.c.l.b16 %v163
    %v799 = vunpack.c.h.b16 %v163
    %v800 = vunpack.c.l.b16 %v164
    %v801 = vunpack.c.h.b16 %v164
    %v802 = vunpack.c.l.b16 %v165
    %v803 = vunpack.c.h.b16 %v165
    %v804 = vunpack.c.l.b16 %v166
    %v805 = vunpack.c.h.b16 %v166
    %v806 = vunpack.c.l.b16 %v167
    %v807 = vunpack.c.h.b16 %v167
    %v808 = vunpack.c.l.b16 %v168
    %v809 = vunpack.c.h.b16 %v168
    %v810 = vunpack.c.l.b16 %v169
    %v811 = vunpack.c.h.b16 %v169
    %v812 = vunpack.c.l.b16 %v170
    %v813 = vunpack.c.h.b16 %v170
    %v814 = vunpack.c.l.b16 %v171
    %v815 = vunpack.c.h.b16 %v171
    %v816 = vunpack.c.l.b16 %v172
    %v817 = vunpack.c.h.b16 %v172
    %v818 = vunpack.c.l.b16 %v173
    %v819 = vunpack.c.h.b16 %v173
    %v820 = vunpack.c.l.b16 %v174
    %v821 = vunpack.c.h.b16 %v174
    %v822 = vunpack.c.l.b16 %v175
    %v823 = vunpack.c.h.b16 %v175
    %v824 = vunpack.c.l.b16 %v176
    %v825 = vunpack.c.h.b16 %v176
    %v826 = vunpack.c.l.b16 %v177
    %v827 = vunpack.c.h.b16 %v177
    %v828 = vunpack.c.l.b16 %v178
    %v829 = vunpack.c.h.b16 %v178
    %v830 = vunpack.c.l.b16 %v179
    %v831 = vunpack.c.h.b16 %v179
    %v832 = vunpack.c.l.b16 %v180
    %v833 = vunpack.c.h.b16 %v180
    %v834 = vunpack.c.l.b16 %v181
    %v835 = vunpack.c.h.b16 %v181
    %v836 = vunpack.c.l.b16 %v182
    %v837 = vunpack.c.h.b16 %v182
    %v838 = vunpack.c.l.b16 %v183
    %v839 = vunpack.c.h.b16 %v183
    %v840 = vunpack.c.l.b16 %v184
    %v841 = vunpack.c.h.b16 %v184
    %v842 = vunpack.c.l.b16 %v185
    %v843 = vunpack.c.h.b16 %v185
    %v844 = vunpack.c.l.b16 %v186
    %v845 = vunpack.c.h.b16 %v186
    %v846 = vunpack.c.l.b16 %v187
    %v847 = vunpack.c.h.b16 %v187
    %v848 = vunpack.c.l.b16 %v188
    %v849 = vunpack.c.h.b16 %v188
    %v850 = vunpack.c.l.b16 %v189
    %v851 = vunpack.c.h.b16 %v189
    %v852 = vunpack.c.l.b16 %v190
    %v853 = vunpack.c.h.b16 %v190
    %v854 = vunpack.c.l.b16 %v191
    %v855 = vunpack.c.h.b16 %v191
    %v856 = vunpack.c.l.b16 %v192
    %v857 = vunpack.c.h.b16 %v192
    %v858 = vunpack.c.l.b16 %v193
    %v859 = vunpack.c.h.b16 %v193
    %v860 = vunpack.c.l.b16 %v194
    %v861 = vunpack.c.h.b16 %v194
    %v862 = vunpack.c.l.b16 %v195
    %v863 = vunpack.c.h.b16 %v195
    %v864 = vunpack.c.l.b16 %v196
    %v865 = vunpack.c.h.b16 %v196
    %v866 = vunpack.c.l.b16 %v197
    %v867 = vunpack.c.h.b16 %v197
    %v868 = vunpack.c.l.b16 %v198
    %v869 = vunpack.c.h.b16 %v198
    %v870 = vunpack.c.l.b16 %v199
    %v871 = vunpack.c.h.b16 %v199
    %v872 = vunpack.c.l.b16 %v200
    %v873 = vunpack.c.h.b16 %v200
    %v874 = vunpack.c.l.b16 %v201
    %v875 = vunpack.c.h.b16 %v201
    %v876 = vunpack.c.l.b16 %v202
    %v877 = vunpack.c.h.b16 %v202
    %v878 = vunpack.c.l.b16 %v203
    %v879 = vunpack.c.h.b16 %v203
    %v880 = vunpack.c.l.b16 %v204
    %v881 = vunpack.c.h.b16 %v204
    %v882 = vunpack.c.l.b16 %v205
    %v883 = vunpack.c.h.b16 %v205
    %v884 = vunpack.c.l.b16 %v206
    %v885 = vunpack.c.h.b16 %v206
    %v886 = vunpack.c.l.b16 %v207
    %v887 = vunpack.c.h.b16 %v207
    %v888 = vunpack.c.l.b16 %v208
    %v889 = vunpack.c.h.b16 %v208
    %v890 = vunpack.c.l.b16 %v209
    %v891 = vunpack.c.h.b16 %v209
    %v892 = vunpack.c.l.b16 %v210
    %v893 = vunpack.c.h.b16 %v210
    %v894 = vunpack.c.l.b16 %v211
    %v895 = vunpack.c.h.b16 %v211
    %v896 = vunpack.c.l.b16 %v212
    %v897 = vunpack.c.h.b16 %v212
    %v898 = vunpack.c.l.b16 %v213
    %v899 = vunpack.c.h.b16 %v213
    %v900 = vunpack.c.l.b16 %v214
    %v901 = vunpack.c.h.b16 %v214
    %v902 = vunpack.c.l.b16 %v215
    %v903 = vunpack.c.h.b16 %v215
    %v904 = vunpack.c.l.b16 %v216
    %v905 = vunpack.c.h.b16 %v216
    %v906 = vunpack.c.l.b16 %v217
    %v907 = vunpack.c.h.b16 %v217
    %v908 = vunpack.c.l.b16 %v218
    %v909 = vunpack.c.h.b16 %v218
    %v910 = vunpack.c.l.b16 %v219
    %v911 = vunpack.c.h.b16 %v219
    %v912 = vunpack.c.l.b16 %v220
    %v913 = vunpack.c.h.b16 %v220
    %v914 = vunpack.c.l.b16 %v221
    %v915 = vunpack.c.h.b16 %v221
    %v916 = vunpack.c.l.b16 %v222
    %v917 = vunpack.c.h.b16 %v222
    %v918 = vunpack.c.l.b16 %v223
    %v919 = vunpack.c.h.b16 %v223
    %v920 = vunpack.c.l.b16 %v224
    %v921 = vunpack.c.h.b16 %v224
    %v922 = vunpack.c.l.b16 %v225
    %v923 = vunpack.c.h.b16 %v225
    %v924 = vunpack.c.l.b16 %v226
    %v925 = vunpack.c.h.b16 %v226
    %v926 = vunpack.c.l.b16 %v227
    %v927 = vunpack.c.h.b16 %v227
    %v928 = vunpack.c.l.b16 %v228
    %v929 = vunpack.c.h.b16 %v228
    %v930 = vunpack.c.l.b16 %v229
    %v931 = vunpack.c.h.b16 %v229
    %v932 = vunpack.c.l.b16 %v230
    %v933 = vunpack.c.h.b16 %v230
    %v934 = vunpack.c.l.b16 %v231
    %v935 = vunpack.c.h.b16 %v231
    %v936 = vunpack.c.l.b16 %v232
    %v937 = vunpack.c.h.b16 %v232
    %v938 = vunpack.c.l.b16 %v233
    %v939 = vunpack.c.h.b16 %v233
    %v940 = vunpack.c.l.b16 %v234
    %v941 = vunpack.c.h.b16 %v234
    %v942 = vunpack.c.l.b16 %v235
    %v943 = vunpack.c.h.b16 %v235
    %v944 = vunpack.c.l.b16 %v236
    %v945 = vunpack.c.h.b16 %v236
    %v946 = vunpack.c.l.b16 %v237
    %v947 = vunpack.c.h.b16 %v237
    %v948 = vunpack.c.l.b16 %v238
    %v949 = vunpack.c.h.b16 %v238
    %v950 = vunpack.c.l.b16 %v239
    %v951 = vunpack.c.h.b16 %v239
    %v952 = vunpack.c.l.b16 %v240
    %v953 = vunpack.c.h.b16 %v240
    %v954 = vunpack.c.l.b16 %v241
    %v955 = vunpack.c.h.b16 %v241
    %v956 = vunpack.c.l.b16 %v242
    %v957 = vunpack.c.h.b16 %v242
    %v958 = vunpack.c.l.b16 %v243
    %v959 = vunpack.c.h.b16 %v243
    %v960 = vunpack.c.l.b16 %v244
    %v961 = vunpack.c.h.b16 %v244
    %v962 = vunpack.c.l.b16 %v245
    %v963 = vunpack.c.h.b16 %v245
    %v964 = vunpack.c.l.b16 %v246
    %v965 = vunpack.c.h.b16 %v246
    %v966 = vunpack.c.l.b16 %v247
    %v967 = vunpack.c.h.b16 %v247
    %v968 = vunpack.c.l.b16 %v248
    %v969 = vunpack.c.h.b16 %v248
    %v970 = vunpack.c.l.b16 %v249
    %v971 = vunpack.c.h.b16 %v249
    %v972 = vunpack.c.l.b16 %v250
    %v973 = vunpack.c.h.b16 %v250
    %v974 = vunpack.c.l.b16 %v251
    %v975 = vunpack.c.h.b16 %v251
    %v976 = vunpack.c.l.b16 %v252
    %v977 = vunpack.c.h.b16 %v252
    %v978 = vunpack.c.l.b16 %v253
    %v979 = vunpack.c.h.b16 %v253
    %v980 = vunpack.c.l.b16 %v254
    %v981 = vunpack.c.h.b16 %v254
    %v982 = vunpack.c.l.b16 %v255
    %v983 = vunpack.c.h.b16 %v255
    %v984 = vunpack.c.l.b16 %v256
    %v985 = vunpack.c.h.b16 %v256
    %v986 = vunpack.c.l.b16 %v257
    %v987 = vunpack.c.h.b16 %v257
    %v988 = vunpack.c.l.b16 %v258
    %v989 = vunpack.c.h.b16 %v258
    %v990 = vunpack.c.l.b16 %v259
    %v991 = vunpack.c.h.b16 %v259
    %v992 = vunpack.c.l.b16 %v260
    %v993 = vunpack.c.h.b16 %v260
    %v994 = vunpack.c.l.b16 %v261
    %v995 = vunpack.c.h.b16 %v261
    %v996 = vunpack.c.l.b16 %v262
    %v997 = vunpack.c.h.b16 %v262
    %v998 = vunpack.c.l.b16 %v263
    %v999 = vunpack.c.h.b16 %v263
    %v1000 = vunpack.c.l.b16 %v264
    %v1001 = vunpack.c.h.b16 %v264
    %v1002 = vunpack.c.l.b16 %v265
    %v1003 = vunpack.c.h.b16 %v265
    %v1004 = vunpack.c.l.b16 %v266
    %v1005 = vunpack.c.h.b16 %v266
    %v1006 = vunpack.c.l.b16 %v267
    %v1007 = vunpack.c.h.b16 %v267
    %v1008 = vunpack.c.l.b16 %v268
    %v1009 = vunpack.c.h.b16 %v268
    %v1010 = vunpack.c.l.b16 %v269
    %v1011 = vunpack.c.h.b16 %v269
    %v1012 = vunpack.c.l.b16 %v270
    %v1013 = vunpack.c.h.b16 %v270
    %v1014 = vunpack.c.l.b16 %v271
    %v1015 = vunpack.c.h.b16 %v271
    %v1016 = vunpack.c.l.b16 %v272
    %v1017 = vunpack.c.h.b16 %v272
    %v1018 = vunpack.c.l.b16 %v273
    %v1019 = vunpack.c.h.b16 %v273
    %v1020 = vunpack.c.l.b16 %v274
    %v1021 = vunpack.c.h.b16 %v274
    %v1022 = vunpack.c.l.b16 %v275
    %v1023 = vunpack.c.h.b16 %v275
    %v1024 = vunpack.c.l.b16 %v276
    %v1025 = vunpack.c.h.b16 %v276
    %v1026 = vunpack.c.l.b16 %v277
    %v1027 = vunpack.c.h.b16 %v277
    %v1028 = vunpack.c.l.b16 %v278
    %v1029 = vunpack.c.h.b16 %v278
    %v1030 = vunpack.c.l.b16 %v279
    %v1031 = vunpack.c.h.b16 %v279
    %v1032 = vunpack.c.l.b16 %v280
    %v1033 = vunpack.c.h.b16 %v280
    %v1034 = vunpack.c.l.b16 %v281
    %v1035 = vunpack.c.h.b16 %v281
    %v1036 = vunpack.c.l.b16 %v282
    %v1037 = vunpack.c.h.b16 %v282
    %v1038 = vunpack.c.l.b16 %v283
    %v1039 = vunpack.c.h.b16 %v283
    %v1040 = vunpack.c.l.b16 %v284
    %v1041 = vunpack.c.h.b16 %v284
    %v1042 = vunpack.c.l.b16 %v285
    %v1043 = vunpack.c.h.b16 %v285
    %v1044 = vunpack.c.l.b16 %v286
    %v1045 = vunpack.c.h.b16 %v286
    %v1046 = vunpack.c.l.b16 %v287
    %v1047 = vunpack.c.h.b16 %v287
    %v1048 = vpack.c.b16 %v552, %v548
    %v1049 = vpack.c.b16 %v553, %v549
    %v1050 = vpack.c.b16 %v554, %v550
    %v1051 = vpack.c.b16 %v555, %v551
    %v1052 = vpack.c.b16 %v560, %v556
    %v1053 = vpack.c.b16 %v561, %v557
    %v1054 = vpack.c.b16 %v562, %v558
    %v1055 = vpack.c.b16 %v563, %v559
    %v1056 = vpack.c.b16 %v568, %v564
    %v1057 = vpack.c.b16 %v569, %v565
    %v1058 = vpack.c.b16 %v570, %v566
    %v1059 = vpack.c.b16 %v571, %v567
    %v1060 = vpack.c.b16 %v576, %v572
    %v1061 = vpack.c.b16 %v577, %v573
    %v1062 = vpack.c.b16 %v578, %v574
    %v1063 = vpack.c.b16 %v579, %v575
    %v1064 = vpack.c.b16 %v584, %v580
    %v1065 = vpack.c.b16 %v585, %v581
    %v1066 = vpack.c.b16 %v586, %v582
    %v1067 = vpack.c.b16 %v587, %v583
    %v1068 = vpack.c.b16 %v592, %v588
    %v1069 = vpack.c.b16 %v593, %v589
    %v1070 = vpack.c.b16 %v594, %v590
    %v1071 = vpack.c.b16 %v595, %v591
    %v1072 = vpack.c.b16 %v600, %v596
    %v1073 = vpack.c.b16 %v601, %v597
    %v1074 = vpack.c.b16 %v602, %v598
    %v1075 = vpack.c.b16 %v603, %v599
    %v1076 = vpack.c.b16 %v608, %v604
    %v1077 = vpack.c.b16 %v609, %v605
    %v1078 = vpack.c.b16 %v610, %v606
    %v1079 = vpack.c.b16 %v611, %v607
    %v1080 = vpack.c.b16 %v616, %v612
    %v1081 = vpack.c.b16 %v617, %v613
    %v1082 = vpack.c.b16 %v618, %v614
    %v1083 = vpack.c.b16 %v619, %v615
    %v1084 = vpack.c.b16 %v624, %v620
    %v1085 = vpack.c.b16 %v625, %v621
    %v1086 = vpack.c.b16 %v626, %v622
    %v1087 = vpack.c.b16 %v627, %v623
    %v1088 = vpack.c.b16 %v632, %v628
    %v1089 = vpack.c.b16 %v633, %v629
    %v1090 = vpack.c.b16 %v634, %v630
    %v1091 = vpack.c.b16 %v635, %v631
    %v1092 = vpack.c.b16 %v640, %v636
    %v1093 = vpack.c.b16 %v641, %v637
    %v1094 = vpack.c.b16 %v642, %v638
    %v1095 = vpack.c.b16 %v643, %v639
    %v1096 = vpack.c.b16 %v648, %v644
    %v1097 = vpack.c.b16 %v649, %v645
    %v1098 = vpack.c.b16 %v650, %v646
    %v1099 = vpack.c.b16 %v651, %v647
    %v1100 = vpack.c.b16 %v656, %v652
    %v1101 = vpack.c.b16 %v657, %v653
    %v1102 = vpack.c.b16 %v658, %v654
    %v1103 = vpack.c.b16 %v659, %v655
    %v1104 = vpack.c.b16 %v664, %v660
    %v1105 = vpack.c.b16 %v665, %v661
    %v1106 = vpack.c.b16 %v666, %v662
    %v1107 = vpack.c.b16 %v667, %v663
    %v1108 = vpack.c.b16 %v672, %v668
    %v1109 = vpack.c.b16 %v673, %v669
    %v1110 = vpack.c.b16 %v674, %v670
    %v1111 = vpack.c.b16 %v675, %v671
    %v1112 = vpack.c.b16 %v680, %v676
    %v1113 = vpack.c.b16 %v681, %v677
    %v1114 = vpack.c.b16 %v682, %v678
    %v1115 = vpack.c.b16 %v683, %v679
    %v1116 = vpack.c.b16 %v688, %v684
    %v1117 = vpack.c.b16 %v689, %v685
    %v1118 = vpack.c.b16 %v690, %v686
    %v1119 = vpack.c.b16 %v691, %v687
    %v1120 = vpack.c.b16 %v696, %v692
    %v1121 = vpack.c.b16 %v697, %v693
    %v1122 = vpack.c.b16 %v698, %v694
    %v1123 = vpack.c.b16 %v699, %v695
    %v1124 = vpack.c.b16 %v704, %v700
    %v1125 = vpack.c.b16 %v705, %v701
    %v1126 = vpack.c.b16 %v706, %v702
    %v1127 = vpack.c.b16 %v707, %v703
    %v1128 = vpack.c.b16 %v712, %v708
    %v1129 = vpack.c.b16 %v713, %v709
    %v1130 = vpack.c.b16 %v714, %v710
    %v1131 = vpack.c.b16 %v715, %v711
    %v1132 = vpack.c.b16 %v720, %v716
    %v1133 = vpack.c.b16 %v721, %v717
    %v1134 = vpack.c.b16 %v722, %v718
    %v1135 = vpack.c.b16 %v723, %v719
    %v1136 = vpack.c.b16 %v728, %v724
    %v1137 = vpack.c.b16 %v729, %v725
    %v1138 = vpack.c.b16 %v730, %v726
    %v1139 = vpack.c.b16 %v731, %v727
    %v1140 = vpack.c.b16 %v736, %v732
    %v1141 = vpack.c.b16 %v737, %v733
    %v1142 = vpack.c.b16 %v738, %v734
    %v1143 = vpack.c.b16 %v739, %v735
    %v1144 = vpack.c.b16 %v744, %v740
    %v1145 = vpack.c.b16 %v745, %v741
    %v1146 = vpack.c.b16 %v746, %v742
    %v1147 = vpack.c.b16 %v747, %v743
    %v1148 = vpack.c.b16 %v752, %v748
    %v1149 = vpack.c.b16 %v753, %v749
    %v1150 = vpack.c.b16 %v754, %v750
    %v1151 = vpack.c.b16 %v755, %v751
    %v1152 = vpack.c.b16 %v760, %v756
    %v1153 = vpack.c.b16 %v761, %v757
    %v1154 = vpack.c.b16 %v762, %v758
    %v1155 = vpack.c.b16 %v763, %v759
    %v1156 = vpack.c.b16 %v768, %v764
    %v1157 = vpack.c.b16 %v769, %v765
    %v1158 = vpack.c.b16 %v770, %v766
    %v1159 = vpack.c.b16 %v771, %v767
    %v1160 = vpack.c.b16 %v776, %v772
    %v1161 = vpack.c.b16 %v777, %v773
    %v1162 = vpack.c.b16 %v778, %v774
    %v1163 = vpack.c.b16 %v779, %v775
    %v1164 = vpack.c.b16 %v784, %v780
    %v1165 = vpack.c.b16 %v785, %v781
    %v1166 = vpack.c.b16 %v786, %v782
    %v1167 = vpack.c.b16 %v787, %v783
    %v1168 = vpack.c.b16 %v792, %v788
    %v1169 = vpack.c.b16 %v793, %v789
    %v1170 = vpack.c.b16 %v794, %v790
    %v1171 = vpack.c.b16 %v795, %v791
    %v1172 = vpack.c.b16 %v800, %v796
    %v1173 = vpack.c.b16 %v801, %v797
    %v1174 = vpack.c.b16 %v802, %v798
    %v1175 = vpack.c.b16 %v803, %v799
    %v1176 = vpack.c.b16 %v808, %v804
    %v1177 = vpack.c.b16 %v809, %v805
    %v1178 = vpack.c.b16 %v810, %v806
    %v1179 = vpack.c.b16 %v811, %v807
    %v1180 = vpack.c.b16 %v816, %v812
    %v1181 = vpack.c.b16 %v817, %v813
    %v1182 = vpack.c.b16 %v818, %v814
    %v1183 = vpack.c.b16 %v819, %v815
    %v1184 = vpack.c.b16 %v824, %v820
    %v1185 = vpack.c.b16 %v825, %v821
    %v1186 = vpack.c.b16 %v826, %v822
    %v1187 = vpack.c.b16 %v827, %v823
    %v1188 = vpack.c.b16 %v832, %v828
    %v1189 = vpack.c.b16 %v833, %v829
    %v1190 = vpack.c.b16 %v834, %v830
    %v1191 = vpack.c.b16 %v835, %v831
    %v1192 = vpack.c.b16 %v840, %v836
    %v1193 = vpack.c.b16 %v841, %v837
    %v1194 = vpack.c.b16 %v842, %v838
    %v1195 = vpack.c.b16 %v843, %v839
    %v1196 = vpack.c.b16 %v848, %v844
    %v1197 = vpack.c.b16 %v849, %v845
    %v1198 = vpack.c.b16 %v850, %v846
    %v1199 = vpack.c.b16 %v851, %v847
    %v1200 = vpack.c.b16 %v856, %v852
    %v1201 = vpack.c.b16 %v857, %v853
    %v1202 = vpack.c.b16 %v858, %v854
    %v1203 = vpack.c.b16 %v859, %v855
    %v1204 = vpack.c.b16 %v864, %v860
    %v1205 = vpack.c.b16 %v865, %v861
    %v1206 = vpack.c.b16 %v866, %v862
    %v1207 = vpack.c.b16 %v867, %v863
    %v1208 = vpack.c.b16 %v872, %v868
    %v1209 = vpack.c.b16 %v873, %v869
    %v1210 = vpack.c.b16 %v874, %v870
    %v1211 = vpack.c.b16 %v875, %v871
    %v1212 = vpack.c.b16 %v880, %v876
    %v1213 = vpack.c.b16 %v881, %v877
    %v1214 = vpack.c.b16 %v882, %v878
    %v1215 = vpack.c.b16 %v883, %v879
    %v1216 = vpack.c.b16 %v888, %v884
    %v1217 = vpack.c.b16 %v889, %v885
    %v1218 = vpack.c.b16 %v890, %v886
    %v1219 = vpack.c.b16 %v891, %v887
    %v1220 = vpack.c.b16 %v896, %v892
    %v1221 = vpack.c.b16 %v897, %v893
    %v1222 = vpack.c.b16 %v898, %v894
    %v1223 = vpack.c.b16 %v899, %v895
    %v1224 = vpack.c.b16 %v904, %v900
    %v1225 = vpack.c.b16 %v905, %v901
    %v1226 = vpack.c.b16 %v906, %v902
    %v1227 = vpack.c.b16 %v907, %v903
    %v1228 = vpack.c.b16 %v912, %v908
    %v1229 = vpack.c.b16 %v913, %v909
    %v1230 = vpack.c.b16 %v914, %v910
    %v1231 = vpack.c.b16 %v915, %v911
    %v1232 = vpack.c.b16 %v920, %v916
    %v1233 = vpack.c.b16 %v921, %v917
    %v1234 = vpack.c.b16 %v922, %v918
    %v1235 = vpack.c.b16 %v923, %v919
    %v1236 = vpack.c.b16 %v928, %v924
    %v1237 = vpack.c.b16 %v929, %v925
    %v1238 = vpack.c.b16 %v930, %v926
    %v1239 = vpack.c.b16 %v931, %v927
    %v1240 = vpack.c.b16 %v936, %v932
    %v1241 = vpack.c.b16 %v937, %v933
    %v1242 = vpack.c.b16 %v938, %v934
    %v1243 = vpack.c.b16 %v939, %v935
    %v1244 = vpack.c.b16 %v944, %v940
    %v1245 = vpack.c.b16 %v945, %v941
    %v1246 = vpack.c.b16 %v946, %v942
    %v1247 = vpack.c.b16 %v947, %v943
    %v1248 = vpack.c.b16 %v952, %v948
    %v1249 = vpack.c.b16 %v953, %v949
    %v1250 = vpack.c.b16 %v954, %v950
    %v1251 = vpack.c.b16 %v955, %v951
    %v1252 = vpack.c.b16 %v960, %v956
    %v1253 = vpack.c.b16 %v961, %v957
    %v1254 = vpack.c.b16 %v962, %v958
    %v1255 = vpack.c.b16 %v963, %v959
    %v1256 = vpack.c.b16 %v968, %v964
    %v1257 = vpack.c.b16 %v969, %v965
    %v1258 = vpack.c.b16 %v970, %v966
    %v1259 = vpack.c.b16 %v971, %v967
    %v1260 = vpack.c.b16 %v976, %v972
    %v1261 = vpack.c.b16 %v977, %v973
    %v1262 = vpack.c.b16 %v978, %v974
    %v1263 = vpack.c.b16 %v979, %v975
    %v1264 = vpack.c.b16 %v984, %v980
    %v1265 = vpack.c.b16 %v985, %v981
    %v1266 = vpack.c.b16 %v986, %v982
    %v1267 = vpack.c.b16 %v987, %v983
    %v1268 = vpack.c.b16 %v992, %v988
    %v1269 = vpack.c.b16 %v993, %v989
    %v1270 = vpack.c.b16 %v994, %v990
    %v1271 = vpack.c.b16 %v995, %v991
    %v1272 = vpack.c.b16 %v1000, %v996
    %v1273 = vpack.c.b16 %v1001, %v997
    %v1274 = vpack.c.b16 %v1002, %v998
    %v1275 = vpack.c.b16 %v1003, %v999
    %v1276 = vpack.c.b16 %v1008, %v1004
    %v1277 = vpack.c.b16 %v1009, %v1005
    %v1278 = vpack.c.b16 %v1010, %v1006
    %v1279 = vpack.c.b16 %v1011, %v1007
    %v1280 = vpack.c.b16 %v1016, %v1012
    %v1281 = vpack.c.b16 %v1017, %v1013
    %v1282 = vpack.c.b16 %v1018, %v1014
    %v1283 = vpack.c.b16 %v1019, %v1015
    %v1284 = vpack.c.b16 %v1024, %v1020
    %v1285 = vpack.c.b16 %v1025, %v1021
    %v1286 = vpack.c.b16 %v1026, %v1022
    %v1287 = vpack.c.b16 %v1027, %v1023
    %v1288 = vpack.c.b16 %v1032, %v1028
    %v1289 = vpack.c.b16 %v1033, %v1029
    %v1290 = vpack.c.b16 %v1034, %v1030
    %v1291 = vpack.c.b16 %v1035, %v1031
    %v1292 = vpack.c.b16 %v1040, %v1036
    %v1293 = vpack.c.b16 %v1041, %v1037
    %v1294 = vpack.c.b16 %v1042, %v1038
    %v1295 = vpack.c.b16 %v1043, %v1039
    %v1296 = vpack.c.b16 %v1044, %v1044
    %v1297 = vpack.c.b16 %v1045, %v1045
    %v1298 = vpack.c.b16 %v1046, %v1046
    %v1299 = vpack.c.b16 %v1047, %v1047
    %vm1548 = vcmask 850944
    %v1550 = vsel %vm1548, %v37, 0
    %vm1552 = vcmask 1043456
    %v1554 = vsel %vm1552, %v1296, 0
    %v1557 = vsel %vm1552, %v1297, 0
    %v1560 = vsel %vm1552, %v1298, 0
    %v1563 = vsel %vm1552, %v1299, 0
    %1565 = vmatpush.bf16.msra.mxu0 %v1076
    %1566 = vmatpush.bf16.msra.mxu0 %v1072
    %1567 = vmatpush.bf16.msra.mxu0 %v1068
    %1568 = vmatpush.bf16.msra.mxu0 %v1064
    %1569 = vmatpush.bf16.msra.mxu0 %v1060
    %1570 = vmatpush.bf16.msra.mxu0 %v1056
    %1571 = vmatpush.bf16.msra.mxu0 %v1052
    %1572 = vmatpush.bf16.msra.mxu0 %v1048
    %1573 = vmatmul.bf16.gmra.mxu0 %v30
    %v1574 = vpop.f32.mrf.mxu0
    %v1575 = vadd.f32 %v290, %v1574
    %v1576 = vpop.f32.mrf.mxu0
    %1577 = vdwg.mxu0
    %1578 = vmatpush.bf16.msra.mxu0 %v1108
    %1579 = vmatpush.bf16.msra.mxu0 %v1104
    %1580 = vmatpush.bf16.msra.mxu0 %v1100
    %1581 = vmatpush.bf16.msra.mxu0 %v1096
    %1582 = vmatpush.bf16.msra.mxu0 %v1092
    %1583 = vmatpush.bf16.msra.mxu0 %v1088
    %1584 = vmatpush.bf16.msra.mxu0 %v1084
    %1585 = vmatpush.bf16.msra.mxu0 %v1080
    %1586 = vmatmul.bf16.gmra.mxu0 %v31
    %v1587 = vpop.f32.mrf.mxu0
    %v1588 = vadd.f32 %v1575, %v1587
    %v1589 = vpop.f32.mrf.mxu0
    %1590 = vdwg.mxu0
    %1591 = vmatpush.bf16.msra.mxu0 %v1140
    %1592 = vmatpush.bf16.msra.mxu0 %v1136
    %1593 = vmatpush.bf16.msra.mxu0 %v1132
    %1594 = vmatpush.bf16.msra.mxu0 %v1128
    %1595 = vmatpush.bf16.msra.mxu0 %v1124
    %1596 = vmatpush.bf16.msra.mxu0 %v1120
    %1597 = vmatpush.bf16.msra.mxu0 %v1116
    %1598 = vmatpush.bf16.msra.mxu0 %v1112
    %1599 = vmatmul.bf16.gmra.mxu0 %v32
    %v1600 = vpop.f32.mrf.mxu0
    %v1601 = vadd.f32 %v1588, %v1600
    %v1602 = vpop.f32.mrf.mxu0
    %1603 = vdwg.mxu0
    %1604 = vmatpush.bf16.msra.mxu0 %v1172
    %1605 = vmatpush.bf16.msra.mxu0 %v1168
    %1606 = vmatpush.bf16.msra.mxu0 %v1164
    %1607 = vmatpush.bf16.msra.mxu0 %v1160
    %1608 = vmatpush.bf16.msra.mxu0 %v1156
    %1609 = vmatpush.bf16.msra.mxu0 %v1152
    %1610 = vmatpush.bf16.msra.mxu0 %v1148
    %1611 = vmatpush.bf16.msra.mxu0 %v1144
    %1612 = vmatmul.bf16.gmra.mxu0 %v33
    %v1613 = vpop.f32.mrf.mxu0
    %v1614 = vadd.f32 %v1601, %v1613
    %v1615 = vpop.f32.mrf.mxu0
    %1616 = vdwg.mxu0
    %1617 = vmatpush.bf16.msra.mxu0 %v1204
    %1618 = vmatpush.bf16.msra.mxu0 %v1200
    %1619 = vmatpush.bf16.msra.mxu0 %v1196
    %1620 = vmatpush.bf16.msra.mxu0 %v1192
    %1621 = vmatpush.bf16.msra.mxu0 %v1188
    %1622 = vmatpush.bf16.msra.mxu0 %v1184
    %1623 = vmatpush.bf16.msra.mxu0 %v1180
    %1624 = vmatpush.bf16.msra.mxu0 %v1176
    %1625 = vmatmul.bf16.gmra.mxu0 %v34
    %v1626 = vpop.f32.mrf.mxu0
    %v1627 = vadd.f32 %v1614, %v1626
    %v1628 = vpop.f32.mrf.mxu0
    %1629 = vdwg.mxu0
    %1630 = vmatpush.bf16.msra.mxu0 %v1236
    %1631 = vmatpush.bf16.msra.mxu0 %v1232
    %1632 = vmatpush.bf16.msra.mxu0 %v1228
    %1633 = vmatpush.bf16.msra.mxu0 %v1224
    %1634 = vmatpush.bf16.msra.mxu0 %v1220
    %1635 = vmatpush.bf16.msra.mxu0 %v1216
    %1636 = vmatpush.bf16.msra.mxu0 %v1212
    %1637 = vmatpush.bf16.msra.mxu0 %v1208
    %1638 = vmatmul.bf16.gmra.mxu0 %v35
    %v1639 = vpop.f32.mrf.mxu0
    %v1640 = vadd.f32 %v1627, %v1639
    %v1641 = vpop.f32.mrf.mxu0
    %1642 = vdwg.mxu0
    %1643 = vmatpush.bf16.msra.mxu0 %v1268
    %1644 = vmatpush.bf16.msra.mxu0 %v1264
    %1645 = vmatpush.bf16.msra.mxu0 %v1260
    %1646 = vmatpush.bf16.msra.mxu0 %v1256
    %1647 = vmatpush.bf16.msra.mxu0 %v1252
    %1648 = vmatpush.bf16.msra.mxu0 %v1248
    %1649 = vmatpush.bf16.msra.mxu0 %v1244
    %1650 = vmatpush.bf16.msra.mxu0 %v1240
    %1651 = vmatmul.bf16.gmra.mxu0 %v36
    %v1652 = vpop.f32.mrf.mxu0
    %v1653 = vadd.f32 %v1640, %v1652
    %v1654 = vpop.f32.mrf.mxu0
    %1655 = vdwg.mxu0
    %1656 = vmatpush.bf16.msra.mxu0 0
    %1657 = vmatpush.bf16.msra.mxu0 %v1554
    %1658 = vmatpush.bf16.msra.mxu0 %v1292
    %1659 = vmatpush.bf16.msra.mxu0 %v1288
    %1660 = vmatpush.bf16.msra.mxu0 %v1284
    %1661 = vmatpush.bf16.msra.mxu0 %v1280
    %1662 = vmatpush.bf16.msra.mxu0 %v1276
    %1663 = vmatpush.bf16.msra.mxu0 %v1272
    %1664 = vmatmul.bf16.gmra.mxu0 %v1550
    %v1665 = vpop.f32.mrf.mxu0
    %v1666 = vadd.f32 %v1653, %v1665
    %v1667 = vpop.f32.mrf.mxu0
    %1668 = vdwg.mxu0
    %1669 = vmatpush.bf16.msra.mxu0 %v1077
    %1670 = vmatpush.bf16.msra.mxu0 %v1073
    %1671 = vmatpush.bf16.msra.mxu0 %v1069
    %1672 = vmatpush.bf16.msra.mxu0 %v1065
    %1673 = vmatpush.bf16.msra.mxu0 %v1061
    %1674 = vmatpush.bf16.msra.mxu0 %v1057
    %1675 = vmatpush.bf16.msra.mxu0 %v1053
    %1676 = vmatpush.bf16.msra.mxu0 %v1049
    %1677 = vmatmul.bf16.gmra.mxu0 %v30
    %v1678 = vpop.f32.mrf.mxu0
    %v1679 = vadd.f32 %v291, %v1678
    %v1680 = vpop.f32.mrf.mxu0
    %1681 = vdwg.mxu0
    %1682 = vmatpush.bf16.msra.mxu0 %v1109
    %1683 = vmatpush.bf16.msra.mxu0 %v1105
    %1684 = vmatpush.bf16.msra.mxu0 %v1101
    %1685 = vmatpush.bf16.msra.mxu0 %v1097
    %1686 = vmatpush.bf16.msra.mxu0 %v1093
    %1687 = vmatpush.bf16.msra.mxu0 %v1089
    %1688 = vmatpush.bf16.msra.mxu0 %v1085
    %1689 = vmatpush.bf16.msra.mxu0 %v1081
    %1690 = vmatmul.bf16.gmra.mxu0 %v31
    %v1691 = vpop.f32.mrf.mxu0
    %v1692 = vadd.f32 %v1679, %v1691
    %v1693 = vpop.f32.mrf.mxu0
    %1694 = vdwg.mxu0
    %1695 = vmatpush.bf16.msra.mxu0 %v1141
    %1696 = vmatpush.bf16.msra.mxu0 %v1137
    %1697 = vmatpush.bf16.msra.mxu0 %v1133
    %1698 = vmatpush.bf16.msra.mxu0 %v1129
    %1699 = vmatpush.bf16.msra.mxu0 %v1125
    %1700 = vmatpush.bf16.msra.mxu0 %v1121
    %1701 = vmatpush.bf16.msra.mxu0 %v1117
    %1702 = vmatpush.bf16.msra.mxu0 %v1113
    %1703 = vmatmul.bf16.gmra.mxu0 %v32
    %v1704 = vpop.f32.mrf.mxu0
    %v1705 = vadd.f32 %v1692, %v1704
    %v1706 = vpop.f32.mrf.mxu0
    %1707 = vdwg.mxu0
    %1708 = vmatpush.bf16.msra.mxu0 %v1173
    %1709 = vmatpush.bf16.msra.mxu0 %v1169
    %1710 = vmatpush.bf16.msra.mxu0 %v1165
    %1711 = vmatpush.bf16.msra.mxu0 %v1161
    %1712 = vmatpush.bf16.msra.mxu0 %v1157
    %1713 = vmatpush.bf16.msra.mxu0 %v1153
    %1714 = vmatpush.bf16.msra.mxu0 %v1149
    %1715 = vmatpush.bf16.msra.mxu0 %v1145
    %1716 = vmatmul.bf16.gmra.mxu0 %v33
    %v1717 = vpop.f32.mrf.mxu0
    %v1718 = vadd.f32 %v1705, %v1717
    %v1719 = vpop.f32.mrf.mxu0
    %1720 = vdwg.mxu0
    %1721 = vmatpush.bf16.msra.mxu0 %v1205
    %1722 = vmatpush.bf16.msra.mxu0 %v1201
    %1723 = vmatpush.bf16.msra.mxu0 %v1197
    %1724 = vmatpush.bf16.msra.mxu0 %v1193
    %1725 = vmatpush.bf16.msra.mxu0 %v1189
    %1726 = vmatpush.bf16.msra.mxu0 %v1185
    %1727 = vmatpush.bf16.msra.mxu0 %v1181
    %1728 = vmatpush.bf16.msra.mxu0 %v1177
    %1729 = vmatmul.bf16.gmra.mxu0 %v34
    %v1730 = vpop.f32.mrf.mxu0
    %v1731 = vadd.f32 %v1718, %v1730
    %v1732 = vpop.f32.mrf.mxu0
    %1733 = vdwg.mxu0
    %1734 = vmatpush.bf16.msra.mxu0 %v1237
    %1735 = vmatpush.bf16.msra.mxu0 %v1233
    %1736 = vmatpush.bf16.msra.mxu0 %v1229
    %1737 = vmatpush.bf16.msra.mxu0 %v1225
    %1738 = vmatpush.bf16.msra.mxu0 %v1221
    %1739 = vmatpush.bf16.msra.mxu0 %v1217
    %1740 = vmatpush.bf16.msra.mxu0 %v1213
    %1741 = vmatpush.bf16.msra.mxu0 %v1209
    %1742 = vmatmul.bf16.gmra.mxu0 %v35
    %v1743 = vpop.f32.mrf.mxu0
    %v1744 = vadd.f32 %v1731, %v1743
    %v1745 = vpop.f32.mrf.mxu0
    %1746 = vdwg.mxu0
    %1747 = vmatpush.bf16.msra.mxu0 %v1269
    %1748 = vmatpush.bf16.msra.mxu0 %v1265
    %1749 = vmatpush.bf16.msra.mxu0 %v1261
    %1750 = vmatpush.bf16.msra.mxu0 %v1257
    %1751 = vmatpush.bf16.msra.mxu0 %v1253
    %1752 = vmatpush.bf16.msra.mxu0 %v1249
    %1753 = vmatpush.bf16.msra.mxu0 %v1245
    %1754 = vmatpush.bf16.msra.mxu0 %v1241
    %1755 = vmatmul.bf16.gmra.mxu0 %v36
    %v1756 = vpop.f32.mrf.mxu0
    %v1757 = vadd.f32 %v1744, %v1756
    %v1758 = vpop.f32.mrf.mxu0
    %1759 = vdwg.mxu0
    %1760 = vmatpush.bf16.msra.mxu0 0
    %1761 = vmatpush.bf16.msra.mxu0 %v1557
    %1762 = vmatpush.bf16.msra.mxu0 %v1293
    %1763 = vmatpush.bf16.msra.mxu0 %v1289
    %1764 = vmatpush.bf16.msra.mxu0 %v1285
    %1765 = vmatpush.bf16.msra.mxu0 %v1281
    %1766 = vmatpush.bf16.msra.mxu0 %v1277
    %1767 = vmatpush.bf16.msra.mxu0 %v1273
    %1768 = vmatmul.bf16.gmra.mxu0 %v1550
    %v1769 = vpop.f32.mrf.mxu0
    %v1770 = vadd.f32 %v1757, %v1769
    %v1771 = vpop.f32.mrf.mxu0
    %1772 = vdwg.mxu0
    %1773 = vmatpush.bf16.msra.mxu0 %v1078
    %1774 = vmatpush.bf16.msra.mxu0 %v1074
    %1775 = vmatpush.bf16.msra.mxu0 %v1070
    %1776 = vmatpush.bf16.msra.mxu0 %v1066
    %1777 = vmatpush.bf16.msra.mxu0 %v1062
    %1778 = vmatpush.bf16.msra.mxu0 %v1058
    %1779 = vmatpush.bf16.msra.mxu0 %v1054
    %1780 = vmatpush.bf16.msra.mxu0 %v1050
    %1781 = vmatmul.bf16.gmra.mxu0 %v30
    %v1782 = vpop.f32.mrf.mxu0
    %v1783 = vadd.f32 %v292, %v1782
    %v1784 = vpop.f32.mrf.mxu0
    %1785 = vdwg.mxu0
    %1786 = vmatpush.bf16.msra.mxu0 %v1110
    %1787 = vmatpush.bf16.msra.mxu0 %v1106
    %1788 = vmatpush.bf16.msra.mxu0 %v1102
    %1789 = vmatpush.bf16.msra.mxu0 %v1098
    %1790 = vmatpush.bf16.msra.mxu0 %v1094
    %1791 = vmatpush.bf16.msra.mxu0 %v1090
    %1792 = vmatpush.bf16.msra.mxu0 %v1086
    %1793 = vmatpush.bf16.msra.mxu0 %v1082
    %1794 = vmatmul.bf16.gmra.mxu0 %v31
    %v1795 = vpop.f32.mrf.mxu0
    %v1796 = vadd.f32 %v1783, %v1795
    %v1797 = vpop.f32.mrf.mxu0
    %1798 = vdwg.mxu0
    %1799 = vmatpush.bf16.msra.mxu0 %v1142
    %1800 = vmatpush.bf16.msra.mxu0 %v1138
    %1801 = vmatpush.bf16.msra.mxu0 %v1134
    %1802 = vmatpush.bf16.msra.mxu0 %v1130
    %1803 = vmatpush.bf16.msra.mxu0 %v1126
    %1804 = vmatpush.bf16.msra.mxu0 %v1122
    %1805 = vmatpush.bf16.msra.mxu0 %v1118
    %1806 = vmatpush.bf16.msra.mxu0 %v1114
    %1807 = vmatmul.bf16.gmra.mxu0 %v32
    %v1808 = vpop.f32.mrf.mxu0
    %v1809 = vadd.f32 %v1796, %v1808
    %v1810 = vpop.f32.mrf.mxu0
    %1811 = vdwg.mxu0
    %1812 = vmatpush.bf16.msra.mxu0 %v1174
    %1813 = vmatpush.bf16.msra.mxu0 %v1170
    %1814 = vmatpush.bf16.msra.mxu0 %v1166
    %1815 = vmatpush.bf16.msra.mxu0 %v1162
    %1816 = vmatpush.bf16.msra.mxu0 %v1158
    %1817 = vmatpush.bf16.msra.mxu0 %v1154
    %1818 = vmatpush.bf16.msra.mxu0 %v1150
    %1819 = vmatpush.bf16.msra.mxu0 %v1146
    %1820 = vmatmul.bf16.gmra.mxu0 %v33
    %v1821 = vpop.f32.mrf.mxu0
    %v1822 = vadd.f32 %v1809, %v1821
    %v1823 = vpop.f32.mrf.mxu0
    %1824 = vdwg.mxu0
    %1825 = vmatpush.bf16.msra.mxu0 %v1206
    %1826 = vmatpush.bf16.msra.mxu0 %v1202
    %1827 = vmatpush.bf16.msra.mxu0 %v1198
    %1828 = vmatpush.bf16.msra.mxu0 %v1194
    %1829 = vmatpush.bf16.msra.mxu0 %v1190
    %1830 = vmatpush.bf16.msra.mxu0 %v1186
    %1831 = vmatpush.bf16.msra.mxu0 %v1182
    %1832 = vmatpush.bf16.msra.mxu0 %v1178
    %1833 = vmatmul.bf16.gmra.mxu0 %v34
    %v1834 = vpop.f32.mrf.mxu0
    %v1835 = vadd.f32 %v1822, %v1834
    %v1836 = vpop.f32.mrf.mxu0
    %1837 = vdwg.mxu0
    %1838 = vmatpush.bf16.msra.mxu0 %v1238
    %1839 = vmatpush.bf16.msra.mxu0 %v1234
    %1840 = vmatpush.bf16.msra.mxu0 %v1230
    %1841 = vmatpush.bf16.msra.mxu0 %v1226
    %1842 = vmatpush.bf16.msra.mxu0 %v1222
    %1843 = vmatpush.bf16.msra.mxu0 %v1218
    %1844 = vmatpush.bf16.msra.mxu0 %v1214
    %1845 = vmatpush.bf16.msra.mxu0 %v1210
    %1846 = vmatmul.bf16.gmra.mxu0 %v35
    %v1847 = vpop.f32.mrf.mxu0
    %v1848 = vadd.f32 %v1835, %v1847
    %v1849 = vpop.f32.mrf.mxu0
    %1850 = vdwg.mxu0
    %1851 = vmatpush.bf16.msra.mxu0 %v1270
    %1852 = vmatpush.bf16.msra.mxu0 %v1266
    %1853 = vmatpush.bf16.msra.mxu0 %v1262
    %1854 = vmatpush.bf16.msra.mxu0 %v1258
    %1855 = vmatpush.bf16.msra.mxu0 %v1254
    %1856 = vmatpush.bf16.msra.mxu0 %v1250
    %1857 = vmatpush.bf16.msra.mxu0 %v1246
    %1858 = vmatpush.bf16.msra.mxu0 %v1242
    %1859 = vmatmul.bf16.gmra.mxu0 %v36
    %v1860 = vpop.f32.mrf.mxu0
    %v1861 = vadd.f32 %v1848, %v1860
    %v1862 = vpop.f32.mrf.mxu0
    %1863 = vdwg.mxu0
    %1864 = vmatpush.bf16.msra.mxu0 0
    %1865 = vmatpush.bf16.msra.mxu0 %v1560
    %1866 = vmatpush.bf16.msra.mxu0 %v1294
    %1867 = vmatpush.bf16.msra.mxu0 %v1290
    %1868 = vmatpush.bf16.msra.mxu0 %v1286
    %1869 = vmatpush.bf16.msra.mxu0 %v1282
    %1870 = vmatpush.bf16.msra.mxu0 %v1278
    %1871 = vmatpush.bf16.msra.mxu0 %v1274
    %1872 = vmatmul.bf16.gmra.mxu0 %v1550
    %v1873 = vpop.f32.mrf.mxu0
    %v1874 = vadd.f32 %v1861, %v1873
    %v1875 = vpop.f32.mrf.mxu0
    %1876 = vdwg.mxu0
    %1877 = vmatpush.bf16.msra.mxu0 %v1079
    %1878 = vmatpush.bf16.msra.mxu0 %v1075
    %1879 = vmatpush.bf16.msra.mxu0 %v1071
    %1880 = vmatpush.bf16.msra.mxu0 %v1067
    %1881 = vmatpush.bf16.msra.mxu0 %v1063
    %1882 = vmatpush.bf16.msra.mxu0 %v1059
    %1883 = vmatpush.bf16.msra.mxu0 %v1055
    %1884 = vmatpush.bf16.msra.mxu0 %v1051
    %1885 = vmatmul.bf16.gmra.mxu0 %v30
    %v1886 = vpop.f32.mrf.mxu0
    %v1887 = vadd.f32 %v293, %v1886
    %v1888 = vpop.f32.mrf.mxu0
    %1889 = vdwg.mxu0
    %1890 = vmatpush.bf16.msra.mxu0 %v1111
    %1891 = vmatpush.bf16.msra.mxu0 %v1107
    %1892 = vmatpush.bf16.msra.mxu0 %v1103
    %1893 = vmatpush.bf16.msra.mxu0 %v1099
    %1894 = vmatpush.bf16.msra.mxu0 %v1095
    %1895 = vmatpush.bf16.msra.mxu0 %v1091
    %1896 = vmatpush.bf16.msra.mxu0 %v1087
    %1897 = vmatpush.bf16.msra.mxu0 %v1083
    %1898 = vmatmul.bf16.gmra.mxu0 %v31
    %v1899 = vpop.f32.mrf.mxu0
    %v1900 = vadd.f32 %v1887, %v1899
    %v1901 = vpop.f32.mrf.mxu0
    %1902 = vdwg.mxu0
    %1903 = vmatpush.bf16.msra.mxu0 %v1143
    %1904 = vmatpush.bf16.msra.mxu0 %v1139
    %1905 = vmatpush.bf16.msra.mxu0 %v1135
    %1906 = vmatpush.bf16.msra.mxu0 %v1131
    %1907 = vmatpush.bf16.msra.mxu0 %v1127
    %1908 = vmatpush.bf16.msra.mxu0 %v1123
    %1909 = vmatpush.bf16.msra.mxu0 %v1119
    %1910 = vmatpush.bf16.msra.mxu0 %v1115
    %1911 = vmatmul.bf16.gmra.mxu0 %v32
    %v1912 = vpop.f32.mrf.mxu0
    %v1913 = vadd.f32 %v1900, %v1912
    %v1914 = vpop.f32.mrf.mxu0
    %1915 = vdwg.mxu0
    %1916 = vmatpush.bf16.msra.mxu0 %v1175
    %1917 = vmatpush.bf16.msra.mxu0 %v1171
    %1918 = vmatpush.bf16.msra.mxu0 %v1167
    %1919 = vmatpush.bf16.msra.mxu0 %v1163
    %1920 = vmatpush.bf16.msra.mxu0 %v1159
    %1921 = vmatpush.bf16.msra.mxu0 %v1155
    %1922 = vmatpush.bf16.msra.mxu0 %v1151
    %1923 = vmatpush.bf16.msra.mxu0 %v1147
    %1924 = vmatmul.bf16.gmra.mxu0 %v33
    %v1925 = vpop.f32.mrf.mxu0
    %v1926 = vadd.f32 %v1913, %v1925
    %v1927 = vpop.f32.mrf.mxu0
    %1928 = vdwg.mxu0
    %1929 = vmatpush.bf16.msra.mxu0 %v1207
    %1930 = vmatpush.bf16.msra.mxu0 %v1203
    %1931 = vmatpush.bf16.msra.mxu0 %v1199
    %1932 = vmatpush.bf16.msra.mxu0 %v1195
    %1933 = vmatpush.bf16.msra.mxu0 %v1191
    %1934 = vmatpush.bf16.msra.mxu0 %v1187
    %1935 = vmatpush.bf16.msra.mxu0 %v1183
    %1936 = vmatpush.bf16.msra.mxu0 %v1179
    %1937 = vmatmul.bf16.gmra.mxu0 %v34
    %v1938 = vpop.f32.mrf.mxu0
    %v1939 = vadd.f32 %v1926, %v1938
    %v1940 = vpop.f32.mrf.mxu0
    %1941 = vdwg.mxu0
    %1942 = vmatpush.bf16.msra.mxu0 %v1239
    %1943 = vmatpush.bf16.msra.mxu0 %v1235
    %1944 = vmatpush.bf16.msra.mxu0 %v1231
    %1945 = vmatpush.bf16.msra.mxu0 %v1227
    %1946 = vmatpush.bf16.msra.mxu0 %v1223
    %1947 = vmatpush.bf16.msra.mxu0 %v1219
    %1948 = vmatpush.bf16.msra.mxu0 %v1215
    %1949 = vmatpush.bf16.msra.mxu0 %v1211
    %1950 = vmatmul.bf16.gmra.mxu0 %v35
    %v1951 = vpop.f32.mrf.mxu0
    %v1952 = vadd.f32 %v1939, %v1951
    %v1953 = vpop.f32.mrf.mxu0
    %1954 = vdwg.mxu0
    %1955 = vmatpush.bf16.msra.mxu0 %v1271
    %1956 = vmatpush.bf16.msra.mxu0 %v1267
    %1957 = vmatpush.bf16.msra.mxu0 %v1263
    %1958 = vmatpush.bf16.msra.mxu0 %v1259
    %1959 = vmatpush.bf16.msra.mxu0 %v1255
    %1960 = vmatpush.bf16.msra.mxu0 %v1251
    %1961 = vmatpush.bf16.msra.mxu0 %v1247
    %1962 = vmatpush.bf16.msra.mxu0 %v1243
    %1963 = vmatmul.bf16.gmra.mxu0 %v36
    %v1964 = vpop.f32.mrf.mxu0
    %v1965 = vadd.f32 %v1952, %v1964
    %v1966 = vpop.f32.mrf.mxu0
    %1967 = vdwg.mxu0
    %1968 = vmatpush.bf16.msra.mxu0 0
    %1969 = vmatpush.bf16.msra.mxu0 %v1563
    %1970 = vmatpush.bf16.msra.mxu0 %v1295
    %1971 = vmatpush.bf16.msra.mxu0 %v1291
    %1972 = vmatpush.bf16.msra.mxu0 %v1287
    %1973 = vmatpush.bf16.msra.mxu0 %v1283
    %1974 = vmatpush.bf16.msra.mxu0 %v1279
    %1975 = vmatpush.bf16.msra.mxu0 %v1275
    %1976 = vmatmul.bf16.gmra.mxu0 %v1550
    %v1977 = vpop.f32.mrf.mxu0
    %v1978 = vadd.f32 %v1965, %v1977
    %v1979 = vpop.f32.mrf.mxu0
    %1980 = vdwg.mxu0
    %v1981 = vmax.f32 %v1666, 0.0
    %v1982 = vmax.f32 %v1770, 0.0
    %v1983 = vmax.f32 %v1874, 0.0
    %v1984 = vmax.f32 %v1978, 0.0
    %v1985 = vpack.c.bf16 %v1981, %v1981
    %v1986 = vpack.c.bf16 %v1982, %v1982
    %v1987 = vpack.c.bf16 %v1983, %v1983
    %v1988 = vpack.c.bf16 %v1984, %v1984
    %v1989 = vld [vmem:[%s3] sm:$0xff]
    %v1990 = vld [vmem:[%s3 + $0x8] sm:$0xff]
    %v1991 = vld [vmem:[%s3 + $0x10] sm:$0xff]
    %v1992 = vld [vmem:[%s3 + $0x18] sm:$0xf]
    %v1993 = vld [vmem:[%s3 + $0x1c] sm:$0xff]
    %v1994 = vld [vmem:[%s3 + $0x24] sm:$0xff]
    %v1995 = vld [vmem:[%s3 + $0x2c] sm:$0xff]
    %v1996 = vld [vmem:[%s3 + $0x34] sm:$0xf]
    %v1997 = vld [vmem:[%s3 + $0x38] sm:$0xff]
    %v1998 = vld [vmem:[%s3 + $0x40] sm:$0xff]
    %v1999 = vld [vmem:[%s3 + $0x48] sm:$0xff]
    %v2000 = vld [vmem:[%s3 + $0x50] sm:$0xf]
    %v2001 = vld [vmem:[%s3 + $0x54] sm:$0xff]
    %v2002 = vld [vmem:[%s3 + $0x5c] sm:$0xff]
    %v2003 = vld [vmem:[%s3 + $0x64] sm:$0xff]
    %v2004 = vld [vmem:[%s3 + $0x6c] sm:$0xf]
    %v2005 = vld [vmem:[%s3 + $0x70] sm:$0xff]
    %v2006 = vld [vmem:[%s3 + $0x78] sm:$0xff]
    %v2007 = vld [vmem:[%s3 + $0x80] sm:$0xff]
    %v2008 = vld [vmem:[%s3 + $0x88] sm:$0xf]
    %v2009 = vld [vmem:[%s3 + $0x8c] sm:$0xff]
    %v2010 = vld [vmem:[%s3 + $0x94] sm:$0xff]
    %v2011 = vld [vmem:[%s3 + $0x9c] sm:$0xff]
    %v2012 = vld [vmem:[%s3 + $0xa4] sm:$0xf]
    %v2013 = vld [vmem:[%s3 + $0xa8] sm:$0xff]
    %v2014 = vld [vmem:[%s3 + $0xb0] sm:$0xff]
    %v2015 = vld [vmem:[%s3 + $0xb8] sm:$0xff]
    %v2016 = vld [vmem:[%s3 + $0xc0] sm:$0xf]
    %v2017 = vld [vmem:[%s3 + $0xc4] sm:$0xff]
    %v2018 = vld [vmem:[%s3 + $0xcc] sm:$0xff]
    %v2019 = vld [vmem:[%s3 + $0xd4] sm:$0xff]
    %v2020 = vld [vmem:[%s3 + $0xdc] sm:$0xf]
    %v2021 = vld [vmem:[%s3 + $0xe0] sm:$0xff]
    %v2022 = vld [vmem:[%s3 + $0xe8] sm:$0xff]
    %v2023 = vld [vmem:[%s3 + $0xf0] sm:$0xff]
    %v2024 = vld [vmem:[%s3 + $0xf8] sm:$0xf]
    %v2025 = vld [vmem:[%s3 + $0xfc] sm:$0xff]
    %v2026 = vld [vmem:[%s3 + $0x104] sm:$0xff]
    %v2027 = vld [vmem:[%s3 + $0x10c] sm:$0xff]
    %v2028 = vld [vmem:[%s3 + $0x114] sm:$0xf]
    %v2029 = vld [vmem:[%s3 + $0x118] sm:$0xff]
    %v2030 = vld [vmem:[%s3 + $0x120] sm:$0xff]
    %v2031 = vld [vmem:[%s3 + $0x128] sm:$0xff]
    %v2032 = vld [vmem:[%s3 + $0x130] sm:$0xf]
    %v2033 = vld [vmem:[%s3 + $0x134] sm:$0xff]
    %v2034 = vld [vmem:[%s3 + $0x13c] sm:$0xff]
    %v2035 = vld [vmem:[%s3 + $0x144] sm:$0xff]
    %v2036 = vld [vmem:[%s3 + $0x14c] sm:$0xf]
    %v2037 = vld [vmem:[%s3 + $0x150] sm:$0xff]
    %v2038 = vld [vmem:[%s3 + $0x158] sm:$0xff]
    %v2039 = vld [vmem:[%s3 + $0x160] sm:$0xff]
    %v2040 = vld [vmem:[%s3 + $0x168] sm:$0xf]
    %v2041 = vld [vmem:[%s3 + $0x16c] sm:$0xff]
    %v2042 = vld [vmem:[%s3 + $0x174] sm:$0xff]
    %v2043 = vld [vmem:[%s3 + $0x17c] sm:$0xff]
    %v2044 = vld [vmem:[%s3 + $0x184] sm:$0xf]
    %v2045 = vld [vmem:[%s3 + $0x188] sm:$0xff]
    %v2046 = vld [vmem:[%s3 + $0x190] sm:$0xff]
    %v2047 = vld [vmem:[%s3 + $0x198] sm:$0xff]
    %v2048 = vld [vmem:[%s3 + $0x1a0] sm:$0xf]
    %v2049 = vld [vmem:[%s3 + $0x1a4] sm:$0xff]
    %v2050 = vld [vmem:[%s3 + $0x1ac] sm:$0xff]
    %v2051 = vld [vmem:[%s3 + $0x1b4] sm:$0xff]
    %v2052 = vld [vmem:[%s3 + $0x1bc] sm:$0xf]
    %v2053 = vld [vmem:[%s3 + $0x1c0] sm:$0xff]
    %v2054 = vld [vmem:[%s3 + $0x1c8] sm:$0xff]
    %v2055 = vld [vmem:[%s3 + $0x1d0] sm:$0xff]
    %v2056 = vld [vmem:[%s3 + $0x1d8] sm:$0xf]
    %v2057 = vld [vmem:[%s3 + $0x1dc] sm:$0xff]
    %v2058 = vld [vmem:[%s3 + $0x1e4] sm:$0xff]
    %v2059 = vld [vmem:[%s3 + $0x1ec] sm:$0xff]
    %v2060 = vld [vmem:[%s3 + $0x1f4] sm:$0xf]
    %v2061 = vld [vmem:[%s3 + $0x1f8] sm:$0xff]
    %v2062 = vld [vmem:[%s3 + $0x200] sm:$0xff]
    %v2063 = vld [vmem:[%s3 + $0x208] sm:$0xff]
    %v2064 = vld [vmem:[%s3 + $0x210] sm:$0xf]
    %v2065 = vld [vmem:[%s3 + $0x214] sm:$0xff]
    %v2066 = vld [vmem:[%s3 + $0x21c] sm:$0xff]
    %v2067 = vld [vmem:[%s3 + $0x224] sm:$0xff]
    %v2068 = vld [vmem:[%s3 + $0x22c] sm:$0xf]
    %v2069 = vld [vmem:[%s3 + $0x230] sm:$0xff]
    %v2070 = vld [vmem:[%s3 + $0x238] sm:$0xff]
    %v2071 = vld [vmem:[%s3 + $0x240] sm:$0xff]
    %v2072 = vld [vmem:[%s3 + $0x248] sm:$0xf]
    %v2073 = vld [vmem:[%s3 + $0x24c] sm:$0xff]
    %v2074 = vld [vmem:[%s3 + $0x254] sm:$0xff]
    %v2075 = vld [vmem:[%s3 + $0x25c] sm:$0xff]
    %v2076 = vld [vmem:[%s3 + $0x264] sm:$0xf]
    %v2077 = vld [vmem:[%s3 + $0x268] sm:$0xff]
    %v2078 = vld [vmem:[%s3 + $0x270] sm:$0xff]
    %v2079 = vld [vmem:[%s3 + $0x278] sm:$0xff]
    %v2080 = vld [vmem:[%s3 + $0x280] sm:$0xf]
    %v2081 = vld [vmem:[%s3 + $0x284] sm:$0xff]
    %v2082 = vld [vmem:[%s3 + $0x28c] sm:$0xff]
    %v2083 = vld [vmem:[%s3 + $0x294] sm:$0xff]
    %v2084 = vld [vmem:[%s3 + $0x29c] sm:$0xf]
    %v2085 = vld [vmem:[%s3 + $0x2a0] sm:$0xff]
    %v2086 = vld [vmem:[%s3 + $0x2a8] sm:$0xff]
    %v2087 = vld [vmem:[%s3 + $0x2b0] sm:$0xff]
    %v2088 = vld [vmem:[%s3 + $0x2b8] sm:$0xf]
    %v2089 = vld [vmem:[%s3 + $0x2bc] sm:$0xff]
    %v2090 = vld [vmem:[%s3 + $0x2c4] sm:$0xff]
    %v2091 = vld [vmem:[%s3 + $0x2cc] sm:$0xff]
    %v2092 = vld [vmem:[%s3 + $0x2d4] sm:$0xf]
    %v2093 = vld [vmem:[%s3 + $0x2d8] sm:$0xff]
    %v2094 = vld [vmem:[%s3 + $0x2e0] sm:$0xff]
    %v2095 = vld [vmem:[%s3 + $0x2e8] sm:$0xff]
    %v2096 = vld [vmem:[%s3 + $0x2f0] sm:$0xf]
    %v2097 = vld [vmem:[%s3 + $0x2f4] sm:$0xff]
    %v2098 = vld [vmem:[%s3 + $0x2fc] sm:$0xff]
    %v2099 = vld [vmem:[%s3 + $0x304] sm:$0xff]
    %v2100 = vld [vmem:[%s3 + $0x30c] sm:$0xf]
    %v2101 = vld [vmem:[%s3 + $0x310] sm:$0xff]
    %v2102 = vld [vmem:[%s3 + $0x318] sm:$0xff]
    %v2103 = vld [vmem:[%s3 + $0x320] sm:$0xff]
    %v2104 = vld [vmem:[%s3 + $0x328] sm:$0xf]
    %v2105 = vld [vmem:[%s3 + $0x32c] sm:$0xff]
    %v2106 = vld [vmem:[%s3 + $0x334] sm:$0xff]
    %v2107 = vld [vmem:[%s3 + $0x33c] sm:$0xff]
    %v2108 = vld [vmem:[%s3 + $0x344] sm:$0xf]
    %v2109 = vld [vmem:[%s3 + $0x348] sm:$0xff]
    %v2110 = vld [vmem:[%s3 + $0x350] sm:$0xff]
    %v2111 = vld [vmem:[%s3 + $0x358] sm:$0xff]
    %v2112 = vld [vmem:[%s3 + $0x360] sm:$0xf]
    %v2113 = vld [vmem:[%s3 + $0x364] sm:$0xff]
    %v2114 = vld [vmem:[%s3 + $0x36c] sm:$0xff]
    %v2115 = vld [vmem:[%s3 + $0x374] sm:$0xff]
    %v2116 = vld [vmem:[%s3 + $0x37c] sm:$0xf]
    %v2117 = vld [vmem:[%s3 + $0x380] sm:$0xff]
    %v2118 = vld [vmem:[%s3 + $0x388] sm:$0xff]
    %v2119 = vld [vmem:[%s3 + $0x390] sm:$0xff]
    %v2120 = vld [vmem:[%s3 + $0x398] sm:$0xf]
    %v2121 = vld [vmem:[%s3 + $0x39c] sm:$0xff]
    %v2122 = vld [vmem:[%s3 + $0x3a4] sm:$0xff]
    %v2123 = vld [vmem:[%s3 + $0x3ac] sm:$0xff]
    %v2124 = vld [vmem:[%s3 + $0x3b4] sm:$0xf]
    %v2125 = vld [vmem:[%s3 + $0x3b8] sm:$0xff]
    %v2126 = vld [vmem:[%s3 + $0x3c0] sm:$0xff]
    %v2127 = vld [vmem:[%s3 + $0x3c8] sm:$0xff]
    %v2128 = vld [vmem:[%s3 + $0x3d0] sm:$0xf]
    %v2129 = vld [vmem:[%s3 + $0x3d4] sm:$0xff]
    %v2130 = vld [vmem:[%s3 + $0x3dc] sm:$0xff]
    %v2131 = vld [vmem:[%s3 + $0x3e4] sm:$0xff]
    %v2132 = vld [vmem:[%s3 + $0x3ec] sm:$0xf]
    %v2133 = vld [vmem:[%s3 + $0x3f0] sm:$0xff]
    %v2134 = vld [vmem:[%s3 + $0x3f8] sm:$0xff]
    %v2135 = vld [vmem:[%s3 + $0x400] sm:$0xff]
    %v2136 = vld [vmem:[%s3 + $0x408] sm:$0xf]
    %v2137 = vld [vmem:[%s3 + $0x40c] sm:$0xff]
    %v2138 = vld [vmem:[%s3 + $0x414] sm:$0xff]
    %v2139 = vld [vmem:[%s3 + $0x41c] sm:$0xff]
    %v2140 = vld [vmem:[%s3 + $0x424] sm:$0xf]
    %v2141 = vld [vmem:[%s3 + $0x428] sm:$0xff]
    %v2142 = vld [vmem:[%s3 + $0x430] sm:$0xff]
    %v2143 = vld [vmem:[%s3 + $0x438] sm:$0xff]
    %v2144 = vld [vmem:[%s3 + $0x440] sm:$0xf]
    %v2145 = vld [vmem:[%s3 + $0x444] sm:$0xff]
    %v2146 = vld [vmem:[%s3 + $0x44c] sm:$0xff]
    %v2147 = vld [vmem:[%s3 + $0x454] sm:$0xff]
    %v2148 = vld [vmem:[%s3 + $0x45c] sm:$0xf]
    %v2149 = vld [vmem:[%s3 + $0x460] sm:$0xff]
    %v2150 = vld [vmem:[%s3 + $0x468] sm:$0xff]
    %v2151 = vld [vmem:[%s3 + $0x470] sm:$0xff]
    %v2152 = vld [vmem:[%s3 + $0x478] sm:$0xf]
    %v2153 = vld [vmem:[%s3 + $0x47c] sm:$0xff]
    %v2154 = vld [vmem:[%s3 + $0x484] sm:$0xff]
    %v2155 = vld [vmem:[%s3 + $0x48c] sm:$0xff]
    %v2156 = vld [vmem:[%s3 + $0x494] sm:$0xf]
    %v2157 = vld [vmem:[%s3 + $0x498] sm:$0xff]
    %v2158 = vld [vmem:[%s3 + $0x4a0] sm:$0xff]
    %v2159 = vld [vmem:[%s3 + $0x4a8] sm:$0xff]
    %v2160 = vld [vmem:[%s3 + $0x4b0] sm:$0xf]
    %v2161 = vld [vmem:[%s3 + $0x4b4] sm:$0xff]
    %v2162 = vld [vmem:[%s3 + $0x4bc] sm:$0xff]
    %v2163 = vld [vmem:[%s3 + $0x4c4] sm:$0xff]
    %v2164 = vld [vmem:[%s3 + $0x4cc] sm:$0xf]
    %v2165 = vld [vmem:[%s3 + $0x4d0] sm:$0xff]
    %v2166 = vld [vmem:[%s3 + $0x4d8] sm:$0xff]
    %v2167 = vld [vmem:[%s3 + $0x4e0] sm:$0xff]
    %v2168 = vld [vmem:[%s3 + $0x4e8] sm:$0xf]
    %v2169 = vld [vmem:[%s3 + $0x4ec] sm:$0xff]
    %v2170 = vld [vmem:[%s3 + $0x4f4] sm:$0xff]
    %v2171 = vld [vmem:[%s3 + $0x4fc] sm:$0xff]
    %v2172 = vld [vmem:[%s3 + $0x504] sm:$0xf]
    %v2173 = vld [vmem:[%s3 + $0x508] sm:$0xff]
    %v2174 = vld [vmem:[%s3 + $0x510] sm:$0xff]
    %v2175 = vld [vmem:[%s3 + $0x518] sm:$0xff]
    %v2176 = vld [vmem:[%s3 + $0x520] sm:$0xf]
    %v2177 = vld [vmem:[%s3 + $0x524] sm:$0xff]
    %v2178 = vld [vmem:[%s3 + $0x52c] sm:$0xff]
    %v2179 = vld [vmem:[%s3 + $0x534] sm:$0xff]
    %v2180 = vld [vmem:[%s3 + $0x53c] sm:$0xf]
    %v2181 = vld [vmem:[%s3 + $0x540] sm:$0xff]
    %v2182 = vld [vmem:[%s3 + $0x548] sm:$0xff]
    %v2183 = vld [vmem:[%s3 + $0x550] sm:$0xff]
    %v2184 = vld [vmem:[%s3 + $0x558] sm:$0xf]
    %v2185 = vld [vmem:[%s3 + $0x55c] sm:$0xff]
    %v2186 = vld [vmem:[%s3 + $0x564] sm:$0xff]
    %v2187 = vld [vmem:[%s3 + $0x56c] sm:$0xff]
    %v2188 = vld [vmem:[%s3 + $0x574] sm:$0xf]
    %v2189 = vld [vmem:[%s3 + $0x578] sm:$0xff]
    %v2190 = vld [vmem:[%s3 + $0x580] sm:$0xff]
    %v2191 = vld [vmem:[%s3 + $0x588] sm:$0xff]
    %v2192 = vld [vmem:[%s3 + $0x590] sm:$0xf]
    %v2193 = vld [vmem:[%s3 + $0x594] sm:$0xff]
    %v2194 = vld [vmem:[%s3 + $0x59c] sm:$0xff]
    %v2195 = vld [vmem:[%s3 + $0x5a4] sm:$0xff]
    %v2196 = vld [vmem:[%s3 + $0x5ac] sm:$0xf]
    %v2197 = vld [vmem:[%s3 + $0x5b0] sm:$0xff]
    %v2198 = vld [vmem:[%s3 + $0x5b8] sm:$0xff]
    %v2199 = vld [vmem:[%s3 + $0x5c0] sm:$0xff]
    %v2200 = vld [vmem:[%s3 + $0x5c8] sm:$0xf]
    %v2201 = vld [vmem:[%s3 + $0x5cc] sm:$0xff]
    %v2202 = vld [vmem:[%s3 + $0x5d4] sm:$0xff]
    %v2203 = vld [vmem:[%s3 + $0x5dc] sm:$0xff]
    %v2204 = vld [vmem:[%s3 + $0x5e4] sm:$0xf]
    %v2205 = vld [vmem:[%s3 + $0x5e8] sm:$0xff]
    %v2206 = vld [vmem:[%s3 + $0x5f0] sm:$0xff]
    %v2207 = vld [vmem:[%s3 + $0x5f8] sm:$0xff]
    %v2208 = vld [vmem:[%s3 + $0x600] sm:$0xf]
    %v2209 = vld [vmem:[%s3 + $0x604] sm:$0xff]
    %v2210 = vld [vmem:[%s3 + $0x60c] sm:$0xff]
    %v2211 = vld [vmem:[%s3 + $0x614] sm:$0xff]
    %v2212 = vld [vmem:[%s3 + $0x61c] sm:$0xf]
    %v2213 = vld [vmem:[%s3 + $0x620] sm:$0xff]
    %v2214 = vld [vmem:[%s3 + $0x628] sm:$0xff]
    %v2215 = vld [vmem:[%s3 + $0x630] sm:$0xff]
    %v2216 = vld [vmem:[%s3 + $0x638] sm:$0xf]
    %v2217 = vld [vmem:[%s3 + $0x63c] sm:$0xff]
    %v2218 = vld [vmem:[%s3 + $0x644] sm:$0xff]
    %v2219 = vld [vmem:[%s3 + $0x64c] sm:$0xff]
    %v2220 = vld [vmem:[%s3 + $0x654] sm:$0xf]
    %v2221 = vld [vmem:[%s3 + $0x658] sm:$0xff]
    %v2222 = vld [vmem:[%s3 + $0x660] sm:$0xff]
    %v2223 = vld [vmem:[%s3 + $0x668] sm:$0xff]
    %v2224 = vld [vmem:[%s3 + $0x670] sm:$0xf]
    %v2225 = vld [vmem:[%s3 + $0x674] sm:$0xff]
    %v2226 = vld [vmem:[%s3 + $0x67c] sm:$0xff]
    %v2227 = vld [vmem:[%s3 + $0x684] sm:$0xff]
    %v2228 = vld [vmem:[%s3 + $0x68c] sm:$0xf]
    %v2229 = vld [vmem:[%s3 + $0x690] sm:$0xff]
    %v2230 = vld [vmem:[%s3 + $0x698] sm:$0xff]
    %v2231 = vld [vmem:[%s3 + $0x6a0] sm:$0xff]
    %v2232 = vld [vmem:[%s3 + $0x6a8] sm:$0xf]
    %v2233 = vld [vmem:[%s3 + $0x6ac] sm:$0xff]
    %v2234 = vld [vmem:[%s3 + $0x6b4] sm:$0xff]
    %v2235 = vld [vmem:[%s3 + $0x6bc] sm:$0xff]
    %v2236 = vld [vmem:[%s3 + $0x6c4] sm:$0xf]
    %v2237 = vld [vmem:[%s3 + $0x6c8] sm:$0xff]
    %v2238 = vld [vmem:[%s3 + $0x6d0] sm:$0xff]
    %v2239 = vld [vmem:[%s3 + $0x6d8] sm:$0xff]
    %v2240 = vld [vmem:[%s3 + $0x6e0] sm:$0xf]
    %v2241 = vld [vmem:[%s3 + $0x6e4] sm:$0xff]
    %v2242 = vld [vmem:[%s3 + $0x6ec] sm:$0xff]
    %v2243 = vld [vmem:[%s3 + $0x6f4] sm:$0xff]
    %v2244 = vld [vmem:[%s3 + $0x6fc] sm:$0xf]
    %v2245 = vld [vmem:[%s4] sm:$0x7f]
    %v2247 = vperm.slane %v2245, 0
    %v2248 = vperm.slane %v2245, 1
    %v2249 = vperm.slane %v2245, 2
    %v2250 = vperm.slane %v2245, 3
    %v2251 = vperm.slane %v2245, 4
    %v2252 = vperm.slane %v2245, 5
    %v2253 = vperm.slane %v2245, 6
    %v2517 = vunpack.c.l.b16 %v1989
    %v2518 = vunpack.c.h.b16 %v1989
    %v2519 = vunpack.c.l.b16 %v1990
    %v2520 = vunpack.c.h.b16 %v1990
    %v2521 = vunpack.c.l.b16 %v1991
    %v2522 = vunpack.c.h.b16 %v1991
    %v2523 = vunpack.c.l.b16 %v1992
    %v2524 = vunpack.c.l.b16 %v1993
    %v2525 = vunpack.c.h.b16 %v1993
    %v2526 = vunpack.c.l.b16 %v1994
    %v2527 = vunpack.c.h.b16 %v1994
    %v2528 = vunpack.c.l.b16 %v1995
    %v2529 = vunpack.c.h.b16 %v1995
    %v2530 = vunpack.c.l.b16 %v1996
    %v2531 = vunpack.c.l.b16 %v1997
    %v2532 = vunpack.c.h.b16 %v1997
    %v2533 = vunpack.c.l.b16 %v1998
    %v2534 = vunpack.c.h.b16 %v1998
    %v2535 = vunpack.c.l.b16 %v1999
    %v2536 = vunpack.c.h.b16 %v1999
    %v2537 = vunpack.c.l.b16 %v2000
    %v2538 = vunpack.c.l.b16 %v2001
    %v2539 = vunpack.c.h.b16 %v2001
    %v2540 = vunpack.c.l.b16 %v2002
    %v2541 = vunpack.c.h.b16 %v2002
    %v2542 = vunpack.c.l.b16 %v2003
    %v2543 = vunpack.c.h.b16 %v2003
    %v2544 = vunpack.c.l.b16 %v2004
    %v2545 = vunpack.c.l.b16 %v2005
    %v2546 = vunpack.c.h.b16 %v2005
    %v2547 = vunpack.c.l.b16 %v2006
    %v2548 = vunpack.c.h.b16 %v2006
    %v2549 = vunpack.c.l.b16 %v2007
    %v2550 = vunpack.c.h.b16 %v2007
    %v2551 = vunpack.c.l.b16 %v2008
    %v2552 = vunpack.c.l.b16 %v2009
    %v2553 = vunpack.c.h.b16 %v2009
    %v2554 = vunpack.c.l.b16 %v2010
    %v2555 = vunpack.c.h.b16 %v2010
    %v2556 = vunpack.c.l.b16 %v2011
    %v2557 = vunpack.c.h.b16 %v2011
    %v2558 = vunpack.c.l.b16 %v2012
    %v2559 = vunpack.c.l.b16 %v2013
    %v2560 = vunpack.c.h.b16 %v2013
    %v2561 = vunpack.c.l.b16 %v2014
    %v2562 = vunpack.c.h.b16 %v2014
    %v2563 = vunpack.c.l.b16 %v2015
    %v2564 = vunpack.c.h.b16 %v2015
    %v2565 = vunpack.c.l.b16 %v2016
    %v2566 = vunpack.c.l.b16 %v2017
    %v2567 = vunpack.c.h.b16 %v2017
    %v2568 = vunpack.c.l.b16 %v2018
    %v2569 = vunpack.c.h.b16 %v2018
    %v2570 = vunpack.c.l.b16 %v2019
    %v2571 = vunpack.c.h.b16 %v2019
    %v2572 = vunpack.c.l.b16 %v2020
    %v2573 = vunpack.c.l.b16 %v2021
    %v2574 = vunpack.c.h.b16 %v2021
    %v2575 = vunpack.c.l.b16 %v2022
    %v2576 = vunpack.c.h.b16 %v2022
    %v2577 = vunpack.c.l.b16 %v2023
    %v2578 = vunpack.c.h.b16 %v2023
    %v2579 = vunpack.c.l.b16 %v2024
    %v2580 = vunpack.c.l.b16 %v2025
    %v2581 = vunpack.c.h.b16 %v2025
    %v2582 = vunpack.c.l.b16 %v2026
    %v2583 = vunpack.c.h.b16 %v2026
    %v2584 = vunpack.c.l.b16 %v2027
    %v2585 = vunpack.c.h.b16 %v2027
    %v2586 = vunpack.c.l.b16 %v2028
    %v2587 = vunpack.c.l.b16 %v2029
    %v2588 = vunpack.c.h.b16 %v2029
    %v2589 = vunpack.c.l.b16 %v2030
    %v2590 = vunpack.c.h.b16 %v2030
    %v2591 = vunpack.c.l.b16 %v2031
    %v2592 = vunpack.c.h.b16 %v2031
    %v2593 = vunpack.c.l.b16 %v2032
    %v2594 = vunpack.c.l.b16 %v2033
    %v2595 = vunpack.c.h.b16 %v2033
    %v2596 = vunpack.c.l.b16 %v2034
    %v2597 = vunpack.c.h.b16 %v2034
    %v2598 = vunpack.c.l.b16 %v2035
    %v2599 = vunpack.c.h.b16 %v2035
    %v2600 = vunpack.c.l.b16 %v2036
    %v2601 = vunpack.c.l.b16 %v2037
    %v2602 = vunpack.c.h.b16 %v2037
    %v2603 = vunpack.c.l.b16 %v2038
    %v2604 = vunpack.c.h.b16 %v2038
    %v2605 = vunpack.c.l.b16 %v2039
    %v2606 = vunpack.c.h.b16 %v2039
    %v2607 = vunpack.c.l.b16 %v2040
    %v2608 = vunpack.c.l.b16 %v2041
    %v2609 = vunpack.c.h.b16 %v2041
    %v2610 = vunpack.c.l.b16 %v2042
    %v2611 = vunpack.c.h.b16 %v2042
    %v2612 = vunpack.c.l.b16 %v2043
    %v2613 = vunpack.c.h.b16 %v2043
    %v2614 = vunpack.c.l.b16 %v2044
    %v2615 = vunpack.c.l.b16 %v2045
    %v2616 = vunpack.c.h.b16 %v2045
    %v2617 = vunpack.c.l.b16 %v2046
    %v2618 = vunpack.c.h.b16 %v2046
    %v2619 = vunpack.c.l.b16 %v2047
    %v2620 = vunpack.c.h.b16 %v2047
    %v2621 = vunpack.c.l.b16 %v2048
    %v2622 = vunpack.c.l.b16 %v2049
    %v2623 = vunpack.c.h.b16 %v2049
    %v2624 = vunpack.c.l.b16 %v2050
    %v2625 = vunpack.c.h.b16 %v2050
    %v2626 = vunpack.c.l.b16 %v2051
    %v2627 = vunpack.c.h.b16 %v2051
    %v2628 = vunpack.c.l.b16 %v2052
    %v2629 = vunpack.c.l.b16 %v2053
    %v2630 = vunpack.c.h.b16 %v2053
    %v2631 = vunpack.c.l.b16 %v2054
    %v2632 = vunpack.c.h.b16 %v2054
    %v2633 = vunpack.c.l.b16 %v2055
    %v2634 = vunpack.c.h.b16 %v2055
    %v2635 = vunpack.c.l.b16 %v2056
    %v2636 = vunpack.c.l.b16 %v2057
    %v2637 = vunpack.c.h.b16 %v2057
    %v2638 = vunpack.c.l.b16 %v2058
    %v2639 = vunpack.c.h.b16 %v2058
    %v2640 = vunpack.c.l.b16 %v2059
    %v2641 = vunpack.c.h.b16 %v2059
    %v2642 = vunpack.c.l.b16 %v2060
    %v2643 = vunpack.c.l.b16 %v2061
    %v2644 = vunpack.c.h.b16 %v2061
    %v2645 = vunpack.c.l.b16 %v2062
    %v2646 = vunpack.c.h.b16 %v2062
    %v2647 = vunpack.c.l.b16 %v2063
    %v2648 = vunpack.c.h.b16 %v2063
    %v2649 = vunpack.c.l.b16 %v2064
    %v2650 = vunpack.c.l.b16 %v2065
    %v2651 = vunpack.c.h.b16 %v2065
    %v2652 = vunpack.c.l.b16 %v2066
    %v2653 = vunpack.c.h.b16 %v2066
    %v2654 = vunpack.c.l.b16 %v2067
    %v2655 = vunpack.c.h.b16 %v2067
    %v2656 = vunpack.c.l.b16 %v2068
    %v2657 = vunpack.c.l.b16 %v2069
    %v2658 = vunpack.c.h.b16 %v2069
    %v2659 = vunpack.c.l.b16 %v2070
    %v2660 = vunpack.c.h.b16 %v2070
    %v2661 = vunpack.c.l.b16 %v2071
    %v2662 = vunpack.c.h.b16 %v2071
    %v2663 = vunpack.c.l.b16 %v2072
    %v2664 = vunpack.c.l.b16 %v2073
    %v2665 = vunpack.c.h.b16 %v2073
    %v2666 = vunpack.c.l.b16 %v2074
    %v2667 = vunpack.c.h.b16 %v2074
    %v2668 = vunpack.c.l.b16 %v2075
    %v2669 = vunpack.c.h.b16 %v2075
    %v2670 = vunpack.c.l.b16 %v2076
    %v2671 = vunpack.c.l.b16 %v2077
    %v2672 = vunpack.c.h.b16 %v2077
    %v2673 = vunpack.c.l.b16 %v2078
    %v2674 = vunpack.c.h.b16 %v2078
    %v2675 = vunpack.c.l.b16 %v2079
    %v2676 = vunpack.c.h.b16 %v2079
    %v2677 = vunpack.c.l.b16 %v2080
    %v2678 = vunpack.c.l.b16 %v2081
    %v2679 = vunpack.c.h.b16 %v2081
    %v2680 = vunpack.c.l.b16 %v2082
    %v2681 = vunpack.c.h.b16 %v2082
    %v2682 = vunpack.c.l.b16 %v2083
    %v2683 = vunpack.c.h.b16 %v2083
    %v2684 = vunpack.c.l.b16 %v2084
    %v2685 = vunpack.c.l.b16 %v2085
    %v2686 = vunpack.c.h.b16 %v2085
    %v2687 = vunpack.c.l.b16 %v2086
    %v2688 = vunpack.c.h.b16 %v2086
    %v2689 = vunpack.c.l.b16 %v2087
    %v2690 = vunpack.c.h.b16 %v2087
    %v2691 = vunpack.c.l.b16 %v2088
    %v2692 = vunpack.c.l.b16 %v2089
    %v2693 = vunpack.c.h.b16 %v2089
    %v2694 = vunpack.c.l.b16 %v2090
    %v2695 = vunpack.c.h.b16 %v2090
    %v2696 = vunpack.c.l.b16 %v2091
    %v2697 = vunpack.c.h.b16 %v2091
    %v2698 = vunpack.c.l.b16 %v2092
    %v2699 = vunpack.c.l.b16 %v2093
    %v2700 = vunpack.c.h.b16 %v2093
    %v2701 = vunpack.c.l.b16 %v2094
    %v2702 = vunpack.c.h.b16 %v2094
    %v2703 = vunpack.c.l.b16 %v2095
    %v2704 = vunpack.c.h.b16 %v2095
    %v2705 = vunpack.c.l.b16 %v2096
    %v2706 = vunpack.c.l.b16 %v2097
    %v2707 = vunpack.c.h.b16 %v2097
    %v2708 = vunpack.c.l.b16 %v2098
    %v2709 = vunpack.c.h.b16 %v2098
    %v2710 = vunpack.c.l.b16 %v2099
    %v2711 = vunpack.c.h.b16 %v2099
    %v2712 = vunpack.c.l.b16 %v2100
    %v2713 = vunpack.c.l.b16 %v2101
    %v2714 = vunpack.c.h.b16 %v2101
    %v2715 = vunpack.c.l.b16 %v2102
    %v2716 = vunpack.c.h.b16 %v2102
    %v2717 = vunpack.c.l.b16 %v2103
    %v2718 = vunpack.c.h.b16 %v2103
    %v2719 = vunpack.c.l.b16 %v2104
    %v2720 = vunpack.c.l.b16 %v2105
    %v2721 = vunpack.c.h.b16 %v2105
    %v2722 = vunpack.c.l.b16 %v2106
    %v2723 = vunpack.c.h.b16 %v2106
    %v2724 = vunpack.c.l.b16 %v2107
    %v2725 = vunpack.c.h.b16 %v2107
    %v2726 = vunpack.c.l.b16 %v2108
    %v2727 = vunpack.c.l.b16 %v2109
    %v2728 = vunpack.c.h.b16 %v2109
    %v2729 = vunpack.c.l.b16 %v2110
    %v2730 = vunpack.c.h.b16 %v2110
    %v2731 = vunpack.c.l.b16 %v2111
    %v2732 = vunpack.c.h.b16 %v2111
    %v2733 = vunpack.c.l.b16 %v2112
    %v2734 = vunpack.c.l.b16 %v2113
    %v2735 = vunpack.c.h.b16 %v2113
    %v2736 = vunpack.c.l.b16 %v2114
    %v2737 = vunpack.c.h.b16 %v2114
    %v2738 = vunpack.c.l.b16 %v2115
    %v2739 = vunpack.c.h.b16 %v2115
    %v2740 = vunpack.c.l.b16 %v2116
    %v2741 = vunpack.c.l.b16 %v2117
    %v2742 = vunpack.c.h.b16 %v2117
    %v2743 = vunpack.c.l.b16 %v2118
    %v2744 = vunpack.c.h.b16 %v2118
    %v2745 = vunpack.c.l.b16 %v2119
    %v2746 = vunpack.c.h.b16 %v2119
    %v2747 = vunpack.c.l.b16 %v2120
    %v2748 = vunpack.c.l.b16 %v2121
    %v2749 = vunpack.c.h.b16 %v2121
    %v2750 = vunpack.c.l.b16 %v2122
    %v2751 = vunpack.c.h.b16 %v2122
    %v2752 = vunpack.c.l.b16 %v2123
    %v2753 = vunpack.c.h.b16 %v2123
    %v2754 = vunpack.c.l.b16 %v2124
    %v2755 = vunpack.c.l.b16 %v2125
    %v2756 = vunpack.c.h.b16 %v2125
    %v2757 = vunpack.c.l.b16 %v2126
    %v2758 = vunpack.c.h.b16 %v2126
    %v2759 = vunpack.c.l.b16 %v2127
    %v2760 = vunpack.c.h.b16 %v2127
    %v2761 = vunpack.c.l.b16 %v2128
    %v2762 = vunpack.c.l.b16 %v2129
    %v2763 = vunpack.c.h.b16 %v2129
    %v2764 = vunpack.c.l.b16 %v2130
    %v2765 = vunpack.c.h.b16 %v2130
    %v2766 = vunpack.c.l.b16 %v2131
    %v2767 = vunpack.c.h.b16 %v2131
    %v2768 = vunpack.c.l.b16 %v2132
    %v2769 = vunpack.c.l.b16 %v2133
    %v2770 = vunpack.c.h.b16 %v2133
    %v2771 = vunpack.c.l.b16 %v2134
    %v2772 = vunpack.c.h.b16 %v2134
    %v2773 = vunpack.c.l.b16 %v2135
    %v2774 = vunpack.c.h.b16 %v2135
    %v2775 = vunpack.c.l.b16 %v2136
    %v2776 = vunpack.c.l.b16 %v2137
    %v2777 = vunpack.c.h.b16 %v2137
    %v2778 = vunpack.c.l.b16 %v2138
    %v2779 = vunpack.c.h.b16 %v2138
    %v2780 = vunpack.c.l.b16 %v2139
    %v2781 = vunpack.c.h.b16 %v2139
    %v2782 = vunpack.c.l.b16 %v2140
    %v2783 = vunpack.c.l.b16 %v2141
    %v2784 = vunpack.c.h.b16 %v2141
    %v2785 = vunpack.c.l.b16 %v2142
    %v2786 = vunpack.c.h.b16 %v2142
    %v2787 = vunpack.c.l.b16 %v2143
    %v2788 = vunpack.c.h.b16 %v2143
    %v2789 = vunpack.c.l.b16 %v2144
    %v2790 = vunpack.c.l.b16 %v2145
    %v2791 = vunpack.c.h.b16 %v2145
    %v2792 = vunpack.c.l.b16 %v2146
    %v2793 = vunpack.c.h.b16 %v2146
    %v2794 = vunpack.c.l.b16 %v2147
    %v2795 = vunpack.c.h.b16 %v2147
    %v2796 = vunpack.c.l.b16 %v2148
    %v2797 = vunpack.c.l.b16 %v2149
    %v2798 = vunpack.c.h.b16 %v2149
    %v2799 = vunpack.c.l.b16 %v2150
    %v2800 = vunpack.c.h.b16 %v2150
    %v2801 = vunpack.c.l.b16 %v2151
    %v2802 = vunpack.c.h.b16 %v2151
    %v2803 = vunpack.c.l.b16 %v2152
    %v2804 = vunpack.c.l.b16 %v2153
    %v2805 = vunpack.c.h.b16 %v2153
    %v2806 = vunpack.c.l.b16 %v2154
    %v2807 = vunpack.c.h.b16 %v2154
    %v2808 = vunpack.c.l.b16 %v2155
    %v2809 = vunpack.c.h.b16 %v2155
    %v2810 = vunpack.c.l.b16 %v2156
    %v2811 = vunpack.c.l.b16 %v2157
    %v2812 = vunpack.c.h.b16 %v2157
    %v2813 = vunpack.c.l.b16 %v2158
    %v2814 = vunpack.c.h.b16 %v2158
    %v2815 = vunpack.c.l.b16 %v2159
    %v2816 = vunpack.c.h.b16 %v2159
    %v2817 = vunpack.c.l.b16 %v2160
    %v2818 = vunpack.c.l.b16 %v2161
    %v2819 = vunpack.c.h.b16 %v2161
    %v2820 = vunpack.c.l.b16 %v2162
    %v2821 = vunpack.c.h.b16 %v2162
    %v2822 = vunpack.c.l.b16 %v2163
    %v2823 = vunpack.c.h.b16 %v2163
    %v2824 = vunpack.c.l.b16 %v2164
    %v2825 = vunpack.c.l.b16 %v2165
    %v2826 = vunpack.c.h.b16 %v2165
    %v2827 = vunpack.c.l.b16 %v2166
    %v2828 = vunpack.c.h.b16 %v2166
    %v2829 = vunpack.c.l.b16 %v2167
    %v2830 = vunpack.c.h.b16 %v2167
    %v2831 = vunpack.c.l.b16 %v2168
    %v2832 = vunpack.c.l.b16 %v2169
    %v2833 = vunpack.c.h.b16 %v2169
    %v2834 = vunpack.c.l.b16 %v2170
    %v2835 = vunpack.c.h.b16 %v2170
    %v2836 = vunpack.c.l.b16 %v2171
    %v2837 = vunpack.c.h.b16 %v2171
    %v2838 = vunpack.c.l.b16 %v2172
    %v2839 = vunpack.c.l.b16 %v2173
    %v2840 = vunpack.c.h.b16 %v2173
    %v2841 = vunpack.c.l.b16 %v2174
    %v2842 = vunpack.c.h.b16 %v2174
    %v2843 = vunpack.c.l.b16 %v2175
    %v2844 = vunpack.c.h.b16 %v2175
    %v2845 = vunpack.c.l.b16 %v2176
    %v2846 = vunpack.c.l.b16 %v2177
    %v2847 = vunpack.c.h.b16 %v2177
    %v2848 = vunpack.c.l.b16 %v2178
    %v2849 = vunpack.c.h.b16 %v2178
    %v2850 = vunpack.c.l.b16 %v2179
    %v2851 = vunpack.c.h.b16 %v2179
    %v2852 = vunpack.c.l.b16 %v2180
    %v2853 = vunpack.c.l.b16 %v2181
    %v2854 = vunpack.c.h.b16 %v2181
    %v2855 = vunpack.c.l.b16 %v2182
    %v2856 = vunpack.c.h.b16 %v2182
    %v2857 = vunpack.c.l.b16 %v2183
    %v2858 = vunpack.c.h.b16 %v2183
    %v2859 = vunpack.c.l.b16 %v2184
    %v2860 = vunpack.c.l.b16 %v2185
    %v2861 = vunpack.c.h.b16 %v2185
    %v2862 = vunpack.c.l.b16 %v2186
    %v2863 = vunpack.c.h.b16 %v2186
    %v2864 = vunpack.c.l.b16 %v2187
    %v2865 = vunpack.c.h.b16 %v2187
    %v2866 = vunpack.c.l.b16 %v2188
    %v2867 = vunpack.c.l.b16 %v2189
    %v2868 = vunpack.c.h.b16 %v2189
    %v2869 = vunpack.c.l.b16 %v2190
    %v2870 = vunpack.c.h.b16 %v2190
    %v2871 = vunpack.c.l.b16 %v2191
    %v2872 = vunpack.c.h.b16 %v2191
    %v2873 = vunpack.c.l.b16 %v2192
    %v2874 = vunpack.c.l.b16 %v2193
    %v2875 = vunpack.c.h.b16 %v2193
    %v2876 = vunpack.c.l.b16 %v2194
    %v2877 = vunpack.c.h.b16 %v2194
    %v2878 = vunpack.c.l.b16 %v2195
    %v2879 = vunpack.c.h.b16 %v2195
    %v2880 = vunpack.c.l.b16 %v2196
    %v2881 = vunpack.c.l.b16 %v2197
    %v2882 = vunpack.c.h.b16 %v2197
    %v2883 = vunpack.c.l.b16 %v2198
    %v2884 = vunpack.c.h.b16 %v2198
    %v2885 = vunpack.c.l.b16 %v2199
    %v2886 = vunpack.c.h.b16 %v2199
    %v2887 = vunpack.c.l.b16 %v2200
    %v2888 = vunpack.c.l.b16 %v2201
    %v2889 = vunpack.c.h.b16 %v2201
    %v2890 = vunpack.c.l.b16 %v2202
    %v2891 = vunpack.c.h.b16 %v2202
    %v2892 = vunpack.c.l.b16 %v2203
    %v2893 = vunpack.c.h.b16 %v2203
    %v2894 = vunpack.c.l.b16 %v2204
    %v2895 = vunpack.c.l.b16 %v2205
    %v2896 = vunpack.c.h.b16 %v2205
    %v2897 = vunpack.c.l.b16 %v2206
    %v2898 = vunpack.c.h.b16 %v2206
    %v2899 = vunpack.c.l.b16 %v2207
    %v2900 = vunpack.c.h.b16 %v2207
    %v2901 = vunpack.c.l.b16 %v2208
    %v2902 = vunpack.c.l.b16 %v2209
    %v2903 = vunpack.c.h.b16 %v2209
    %v2904 = vunpack.c.l.b16 %v2210
    %v2905 = vunpack.c.h.b16 %v2210
    %v2906 = vunpack.c.l.b16 %v2211
    %v2907 = vunpack.c.h.b16 %v2211
    %v2908 = vunpack.c.l.b16 %v2212
    %v2909 = vunpack.c.l.b16 %v2213
    %v2910 = vunpack.c.h.b16 %v2213
    %v2911 = vunpack.c.l.b16 %v2214
    %v2912 = vunpack.c.h.b16 %v2214
    %v2913 = vunpack.c.l.b16 %v2215
    %v2914 = vunpack.c.h.b16 %v2215
    %v2915 = vunpack.c.l.b16 %v2216
    %v2916 = vunpack.c.l.b16 %v2217
    %v2917 = vunpack.c.h.b16 %v2217
    %v2918 = vunpack.c.l.b16 %v2218
    %v2919 = vunpack.c.h.b16 %v2218
    %v2920 = vunpack.c.l.b16 %v2219
    %v2921 = vunpack.c.h.b16 %v2219
    %v2922 = vunpack.c.l.b16 %v2220
    %v2923 = vunpack.c.l.b16 %v2221
    %v2924 = vunpack.c.h.b16 %v2221
    %v2925 = vunpack.c.l.b16 %v2222
    %v2926 = vunpack.c.h.b16 %v2222
    %v2927 = vunpack.c.l.b16 %v2223
    %v2928 = vunpack.c.h.b16 %v2223
    %v2929 = vunpack.c.l.b16 %v2224
    %v2930 = vunpack.c.l.b16 %v2225
    %v2931 = vunpack.c.h.b16 %v2225
    %v2932 = vunpack.c.l.b16 %v2226
    %v2933 = vunpack.c.h.b16 %v2226
    %v2934 = vunpack.c.l.b16 %v2227
    %v2935 = vunpack.c.h.b16 %v2227
    %v2936 = vunpack.c.l.b16 %v2228
    %v2937 = vunpack.c.l.b16 %v2229
    %v2938 = vunpack.c.h.b16 %v2229
    %v2939 = vunpack.c.l.b16 %v2230
    %v2940 = vunpack.c.h.b16 %v2230
    %v2941 = vunpack.c.l.b16 %v2231
    %v2942 = vunpack.c.h.b16 %v2231
    %v2943 = vunpack.c.l.b16 %v2232
    %v2944 = vunpack.c.l.b16 %v2233
    %v2945 = vunpack.c.h.b16 %v2233
    %v2946 = vunpack.c.l.b16 %v2234
    %v2947 = vunpack.c.h.b16 %v2234
    %v2948 = vunpack.c.l.b16 %v2235
    %v2949 = vunpack.c.h.b16 %v2235
    %v2950 = vunpack.c.l.b16 %v2236
    %v2951 = vunpack.c.l.b16 %v2237
    %v2952 = vunpack.c.h.b16 %v2237
    %v2953 = vunpack.c.l.b16 %v2238
    %v2954 = vunpack.c.h.b16 %v2238
    %v2955 = vunpack.c.l.b16 %v2239
    %v2956 = vunpack.c.h.b16 %v2239
    %v2957 = vunpack.c.l.b16 %v2240
    %v2958 = vunpack.c.l.b16 %v2241
    %v2959 = vunpack.c.h.b16 %v2241
    %v2960 = vunpack.c.l.b16 %v2242
    %v2961 = vunpack.c.h.b16 %v2242
    %v2962 = vunpack.c.l.b16 %v2243
    %v2963 = vunpack.c.h.b16 %v2243
    %v2964 = vunpack.c.l.b16 %v2244
    %v2965 = vpack.c.b16 %v2524, %v2517
    %v2966 = vpack.c.b16 %v2525, %v2518
    %v2967 = vpack.c.b16 %v2526, %v2519
    %v2968 = vpack.c.b16 %v2527, %v2520
    %v2969 = vpack.c.b16 %v2528, %v2521
    %v2970 = vpack.c.b16 %v2529, %v2522
    %v2971 = vpack.c.b16 %v2530, %v2523
    %v2972 = vpack.c.b16 %v2538, %v2531
    %v2973 = vpack.c.b16 %v2539, %v2532
    %v2974 = vpack.c.b16 %v2540, %v2533
    %v2975 = vpack.c.b16 %v2541, %v2534
    %v2976 = vpack.c.b16 %v2542, %v2535
    %v2977 = vpack.c.b16 %v2543, %v2536
    %v2978 = vpack.c.b16 %v2544, %v2537
    %v2979 = vpack.c.b16 %v2552, %v2545
    %v2980 = vpack.c.b16 %v2553, %v2546
    %v2981 = vpack.c.b16 %v2554, %v2547
    %v2982 = vpack.c.b16 %v2555, %v2548
    %v2983 = vpack.c.b16 %v2556, %v2549
    %v2984 = vpack.c.b16 %v2557, %v2550
    %v2985 = vpack.c.b16 %v2558, %v2551
    %v2986 = vpack.c.b16 %v2566, %v2559
    %v2987 = vpack.c.b16 %v2567, %v2560
    %v2988 = vpack.c.b16 %v2568, %v2561
    %v2989 = vpack.c.b16 %v2569, %v2562
    %v2990 = vpack.c.b16 %v2570, %v2563
    %v2991 = vpack.c.b16 %v2571, %v2564
    %v2992 = vpack.c.b16 %v2572, %v2565
    %v2993 = vpack.c.b16 %v2580, %v2573
    %v2994 = vpack.c.b16 %v2581, %v2574
    %v2995 = vpack.c.b16 %v2582, %v2575
    %v2996 = vpack.c.b16 %v2583, %v2576
    %v2997 = vpack.c.b16 %v2584, %v2577
    %v2998 = vpack.c.b16 %v2585, %v2578
    %v2999 = vpack.c.b16 %v2586, %v2579
    %v3000 = vpack.c.b16 %v2594, %v2587
    %v3001 = vpack.c.b16 %v2595, %v2588
    %v3002 = vpack.c.b16 %v2596, %v2589
    %v3003 = vpack.c.b16 %v2597, %v2590
    %v3004 = vpack.c.b16 %v2598, %v2591
    %v3005 = vpack.c.b16 %v2599, %v2592
    %v3006 = vpack.c.b16 %v2600, %v2593
    %v3007 = vpack.c.b16 %v2608, %v2601
    %v3008 = vpack.c.b16 %v2609, %v2602
    %v3009 = vpack.c.b16 %v2610, %v2603
    %v3010 = vpack.c.b16 %v2611, %v2604
    %v3011 = vpack.c.b16 %v2612, %v2605
    %v3012 = vpack.c.b16 %v2613, %v2606
    %v3013 = vpack.c.b16 %v2614, %v2607
    %v3014 = vpack.c.b16 %v2622, %v2615
    %v3015 = vpack.c.b16 %v2623, %v2616
    %v3016 = vpack.c.b16 %v2624, %v2617
    %v3017 = vpack.c.b16 %v2625, %v2618
    %v3018 = vpack.c.b16 %v2626, %v2619
    %v3019 = vpack.c.b16 %v2627, %v2620
    %v3020 = vpack.c.b16 %v2628, %v2621
    %v3021 = vpack.c.b16 %v2636, %v2629
    %v3022 = vpack.c.b16 %v2637, %v2630
    %v3023 = vpack.c.b16 %v2638, %v2631
    %v3024 = vpack.c.b16 %v2639, %v2632
    %v3025 = vpack.c.b16 %v2640, %v2633
    %v3026 = vpack.c.b16 %v2641, %v2634
    %v3027 = vpack.c.b16 %v2642, %v2635
    %v3028 = vpack.c.b16 %v2650, %v2643
    %v3029 = vpack.c.b16 %v2651, %v2644
    %v3030 = vpack.c.b16 %v2652, %v2645
    %v3031 = vpack.c.b16 %v2653, %v2646
    %v3032 = vpack.c.b16 %v2654, %v2647
    %v3033 = vpack.c.b16 %v2655, %v2648
    %v3034 = vpack.c.b16 %v2656, %v2649
    %v3035 = vpack.c.b16 %v2664, %v2657
    %v3036 = vpack.c.b16 %v2665, %v2658
    %v3037 = vpack.c.b16 %v2666, %v2659
    %v3038 = vpack.c.b16 %v2667, %v2660
    %v3039 = vpack.c.b16 %v2668, %v2661
    %v3040 = vpack.c.b16 %v2669, %v2662
    %v3041 = vpack.c.b16 %v2670, %v2663
    %v3042 = vpack.c.b16 %v2678, %v2671
    %v3043 = vpack.c.b16 %v2679, %v2672
    %v3044 = vpack.c.b16 %v2680, %v2673
    %v3045 = vpack.c.b16 %v2681, %v2674
    %v3046 = vpack.c.b16 %v2682, %v2675
    %v3047 = vpack.c.b16 %v2683, %v2676
    %v3048 = vpack.c.b16 %v2684, %v2677
    %v3049 = vpack.c.b16 %v2692, %v2685
    %v3050 = vpack.c.b16 %v2693, %v2686
    %v3051 = vpack.c.b16 %v2694, %v2687
    %v3052 = vpack.c.b16 %v2695, %v2688
    %v3053 = vpack.c.b16 %v2696, %v2689
    %v3054 = vpack.c.b16 %v2697, %v2690
    %v3055 = vpack.c.b16 %v2698, %v2691
    %v3056 = vpack.c.b16 %v2706, %v2699
    %v3057 = vpack.c.b16 %v2707, %v2700
    %v3058 = vpack.c.b16 %v2708, %v2701
    %v3059 = vpack.c.b16 %v2709, %v2702
    %v3060 = vpack.c.b16 %v2710, %v2703
    %v3061 = vpack.c.b16 %v2711, %v2704
    %v3062 = vpack.c.b16 %v2712, %v2705
    %v3063 = vpack.c.b16 %v2720, %v2713
    %v3064 = vpack.c.b16 %v2721, %v2714
    %v3065 = vpack.c.b16 %v2722, %v2715
    %v3066 = vpack.c.b16 %v2723, %v2716
    %v3067 = vpack.c.b16 %v2724, %v2717
    %v3068 = vpack.c.b16 %v2725, %v2718
    %v3069 = vpack.c.b16 %v2726, %v2719
    %v3070 = vpack.c.b16 %v2734, %v2727
    %v3071 = vpack.c.b16 %v2735, %v2728
    %v3072 = vpack.c.b16 %v2736, %v2729
    %v3073 = vpack.c.b16 %v2737, %v2730
    %v3074 = vpack.c.b16 %v2738, %v2731
    %v3075 = vpack.c.b16 %v2739, %v2732
    %v3076 = vpack.c.b16 %v2740, %v2733
    %v3077 = vpack.c.b16 %v2748, %v2741
    %v3078 = vpack.c.b16 %v2749, %v2742
    %v3079 = vpack.c.b16 %v2750, %v2743
    %v3080 = vpack.c.b16 %v2751, %v2744
    %v3081 = vpack.c.b16 %v2752, %v2745
    %v3082 = vpack.c.b16 %v2753, %v2746
    %v3083 = vpack.c.b16 %v2754, %v2747
    %v3084 = vpack.c.b16 %v2762, %v2755
    %v3085 = vpack.c.b16 %v2763, %v2756
    %v3086 = vpack.c.b16 %v2764, %v2757
    %v3087 = vpack.c.b16 %v2765, %v2758
    %v3088 = vpack.c.b16 %v2766, %v2759
    %v3089 = vpack.c.b16 %v2767, %v2760
    %v3090 = vpack.c.b16 %v2768, %v2761
    %v3091 = vpack.c.b16 %v2776, %v2769
    %v3092 = vpack.c.b16 %v2777, %v2770
    %v3093 = vpack.c.b16 %v2778, %v2771
    %v3094 = vpack.c.b16 %v2779, %v2772
    %v3095 = vpack.c.b16 %v2780, %v2773
    %v3096 = vpack.c.b16 %v2781, %v2774
    %v3097 = vpack.c.b16 %v2782, %v2775
    %v3098 = vpack.c.b16 %v2790, %v2783
    %v3099 = vpack.c.b16 %v2791, %v2784
    %v3100 = vpack.c.b16 %v2792, %v2785
    %v3101 = vpack.c.b16 %v2793, %v2786
    %v3102 = vpack.c.b16 %v2794, %v2787
    %v3103 = vpack.c.b16 %v2795, %v2788
    %v3104 = vpack.c.b16 %v2796, %v2789
    %v3105 = vpack.c.b16 %v2804, %v2797
    %v3106 = vpack.c.b16 %v2805, %v2798
    %v3107 = vpack.c.b16 %v2806, %v2799
    %v3108 = vpack.c.b16 %v2807, %v2800
    %v3109 = vpack.c.b16 %v2808, %v2801
    %v3110 = vpack.c.b16 %v2809, %v2802
    %v3111 = vpack.c.b16 %v2810, %v2803
    %v3112 = vpack.c.b16 %v2818, %v2811
    %v3113 = vpack.c.b16 %v2819, %v2812
    %v3114 = vpack.c.b16 %v2820, %v2813
    %v3115 = vpack.c.b16 %v2821, %v2814
    %v3116 = vpack.c.b16 %v2822, %v2815
    %v3117 = vpack.c.b16 %v2823, %v2816
    %v3118 = vpack.c.b16 %v2824, %v2817
    %v3119 = vpack.c.b16 %v2832, %v2825
    %v3120 = vpack.c.b16 %v2833, %v2826
    %v3121 = vpack.c.b16 %v2834, %v2827
    %v3122 = vpack.c.b16 %v2835, %v2828
    %v3123 = vpack.c.b16 %v2836, %v2829
    %v3124 = vpack.c.b16 %v2837, %v2830
    %v3125 = vpack.c.b16 %v2838, %v2831
    %v3126 = vpack.c.b16 %v2846, %v2839
    %v3127 = vpack.c.b16 %v2847, %v2840
    %v3128 = vpack.c.b16 %v2848, %v2841
    %v3129 = vpack.c.b16 %v2849, %v2842
    %v3130 = vpack.c.b16 %v2850, %v2843
    %v3131 = vpack.c.b16 %v2851, %v2844
    %v3132 = vpack.c.b16 %v2852, %v2845
    %v3133 = vpack.c.b16 %v2860, %v2853
    %v3134 = vpack.c.b16 %v2861, %v2854
    %v3135 = vpack.c.b16 %v2862, %v2855
    %v3136 = vpack.c.b16 %v2863, %v2856
    %v3137 = vpack.c.b16 %v2864, %v2857
    %v3138 = vpack.c.b16 %v2865, %v2858
    %v3139 = vpack.c.b16 %v2866, %v2859
    %v3140 = vpack.c.b16 %v2874, %v2867
    %v3141 = vpack.c.b16 %v2875, %v2868
    %v3142 = vpack.c.b16 %v2876, %v2869
    %v3143 = vpack.c.b16 %v2877, %v2870
    %v3144 = vpack.c.b16 %v2878, %v2871
    %v3145 = vpack.c.b16 %v2879, %v2872
    %v3146 = vpack.c.b16 %v2880, %v2873
    %v3147 = vpack.c.b16 %v2888, %v2881
    %v3148 = vpack.c.b16 %v2889, %v2882
    %v3149 = vpack.c.b16 %v2890, %v2883
    %v3150 = vpack.c.b16 %v2891, %v2884
    %v3151 = vpack.c.b16 %v2892, %v2885
    %v3152 = vpack.c.b16 %v2893, %v2886
    %v3153 = vpack.c.b16 %v2894, %v2887
    %v3154 = vpack.c.b16 %v2902, %v2895
    %v3155 = vpack.c.b16 %v2903, %v2896
    %v3156 = vpack.c.b16 %v2904, %v2897
    %v3157 = vpack.c.b16 %v2905, %v2898
    %v3158 = vpack.c.b16 %v2906, %v2899
    %v3159 = vpack.c.b16 %v2907, %v2900
    %v3160 = vpack.c.b16 %v2908, %v2901
    %v3161 = vpack.c.b16 %v2916, %v2909
    %v3162 = vpack.c.b16 %v2917, %v2910
    %v3163 = vpack.c.b16 %v2918, %v2911
    %v3164 = vpack.c.b16 %v2919, %v2912
    %v3165 = vpack.c.b16 %v2920, %v2913
    %v3166 = vpack.c.b16 %v2921, %v2914
    %v3167 = vpack.c.b16 %v2922, %v2915
    %v3168 = vpack.c.b16 %v2930, %v2923
    %v3169 = vpack.c.b16 %v2931, %v2924
    %v3170 = vpack.c.b16 %v2932, %v2925
    %v3171 = vpack.c.b16 %v2933, %v2926
    %v3172 = vpack.c.b16 %v2934, %v2927
    %v3173 = vpack.c.b16 %v2935, %v2928
    %v3174 = vpack.c.b16 %v2936, %v2929
    %v3175 = vpack.c.b16 %v2944, %v2937
    %v3176 = vpack.c.b16 %v2945, %v2938
    %v3177 = vpack.c.b16 %v2946, %v2939
    %v3178 = vpack.c.b16 %v2947, %v2940
    %v3179 = vpack.c.b16 %v2948, %v2941
    %v3180 = vpack.c.b16 %v2949, %v2942
    %v3181 = vpack.c.b16 %v2950, %v2943
    %v3182 = vpack.c.b16 %v2958, %v2951
    %v3183 = vpack.c.b16 %v2959, %v2952
    %v3184 = vpack.c.b16 %v2960, %v2953
    %v3185 = vpack.c.b16 %v2961, %v2954
    %v3186 = vpack.c.b16 %v2962, %v2955
    %v3187 = vpack.c.b16 %v2963, %v2956
    %v3188 = vpack.c.b16 %v2964, %v2957
    %3413 = vmatpush.bf16.msra.mxu0 %v3014
    %3414 = vmatpush.bf16.msra.mxu0 %v3007
    %3415 = vmatpush.bf16.msra.mxu0 %v3000
    %3416 = vmatpush.bf16.msra.mxu0 %v2993
    %3417 = vmatpush.bf16.msra.mxu0 %v2986
    %3418 = vmatpush.bf16.msra.mxu0 %v2979
    %3419 = vmatpush.bf16.msra.mxu0 %v2972
    %3420 = vmatpush.bf16.msra.mxu0 %v2965
    %3421 = vmatmul.bf16.gmra.mxu0 %v1985
    %v3422 = vpop.f32.mrf.mxu0
    %v3423 = vadd.f32 %v2247, %v3422
    %v3424 = vpop.f32.mrf.mxu0
    %3425 = vdwg.mxu0
    %3426 = vmatpush.bf16.msra.mxu0 %v3070
    %3427 = vmatpush.bf16.msra.mxu0 %v3063
    %3428 = vmatpush.bf16.msra.mxu0 %v3056
    %3429 = vmatpush.bf16.msra.mxu0 %v3049
    %3430 = vmatpush.bf16.msra.mxu0 %v3042
    %3431 = vmatpush.bf16.msra.mxu0 %v3035
    %3432 = vmatpush.bf16.msra.mxu0 %v3028
    %3433 = vmatpush.bf16.msra.mxu0 %v3021
    %3434 = vmatmul.bf16.gmra.mxu0 %v1986
    %v3435 = vpop.f32.mrf.mxu0
    %v3436 = vadd.f32 %v3423, %v3435
    %v3437 = vpop.f32.mrf.mxu0
    %3438 = vdwg.mxu0
    %3439 = vmatpush.bf16.msra.mxu0 %v3126
    %3440 = vmatpush.bf16.msra.mxu0 %v3119
    %3441 = vmatpush.bf16.msra.mxu0 %v3112
    %3442 = vmatpush.bf16.msra.mxu0 %v3105
    %3443 = vmatpush.bf16.msra.mxu0 %v3098
    %3444 = vmatpush.bf16.msra.mxu0 %v3091
    %3445 = vmatpush.bf16.msra.mxu0 %v3084
    %3446 = vmatpush.bf16.msra.mxu0 %v3077
    %3447 = vmatmul.bf16.gmra.mxu0 %v1987
    %v3448 = vpop.f32.mrf.mxu0
    %v3449 = vadd.f32 %v3436, %v3448
    %v3450 = vpop.f32.mrf.mxu0
    %3451 = vdwg.mxu0
    %3452 = vmatpush.bf16.msra.mxu0 %v3182
    %3453 = vmatpush.bf16.msra.mxu0 %v3175
    %3454 = vmatpush.bf16.msra.mxu0 %v3168
    %3455 = vmatpush.bf16.msra.mxu0 %v3161
    %3456 = vmatpush.bf16.msra.mxu0 %v3154
    %3457 = vmatpush.bf16.msra.mxu0 %v3147
    %3458 = vmatpush.bf16.msra.mxu0 %v3140
    %3459 = vmatpush.bf16.msra.mxu0 %v3133
    %3460 = vmatmul.bf16.gmra.mxu0 %v1988
    %v3461 = vpop.f32.mrf.mxu0
    %v3462 = vadd.f32 %v3449, %v3461
    %v3463 = vpop.f32.mrf.mxu0
    %3464 = vdwg.mxu0
    %3465 = vmatpush.bf16.msra.mxu0 %v3015
    %3466 = vmatpush.bf16.msra.mxu0 %v3008
    %3467 = vmatpush.bf16.msra.mxu0 %v3001
    %3468 = vmatpush.bf16.msra.mxu0 %v2994
    %3469 = vmatpush.bf16.msra.mxu0 %v2987
    %3470 = vmatpush.bf16.msra.mxu0 %v2980
    %3471 = vmatpush.bf16.msra.mxu0 %v2973
    %3472 = vmatpush.bf16.msra.mxu0 %v2966
    %3473 = vmatmul.bf16.gmra.mxu0 %v1985
    %v3474 = vpop.f32.mrf.mxu0
    %v3475 = vadd.f32 %v2248, %v3474
    %v3476 = vpop.f32.mrf.mxu0
    %3477 = vdwg.mxu0
    %3478 = vmatpush.bf16.msra.mxu0 %v3071
    %3479 = vmatpush.bf16.msra.mxu0 %v3064
    %3480 = vmatpush.bf16.msra.mxu0 %v3057
    %3481 = vmatpush.bf16.msra.mxu0 %v3050
    %3482 = vmatpush.bf16.msra.mxu0 %v3043
    %3483 = vmatpush.bf16.msra.mxu0 %v3036
    %3484 = vmatpush.bf16.msra.mxu0 %v3029
    %3485 = vmatpush.bf16.msra.mxu0 %v3022
    %3486 = vmatmul.bf16.gmra.mxu0 %v1986
    %v3487 = vpop.f32.mrf.mxu0
    %v3488 = vadd.f32 %v3475, %v3487
    %v3489 = vpop.f32.mrf.mxu0
    %3490 = vdwg.mxu0
    %3491 = vmatpush.bf16.msra.mxu0 %v3127
    %3492 = vmatpush.bf16.msra.mxu0 %v3120
    %3493 = vmatpush.bf16.msra.mxu0 %v3113
    %3494 = vmatpush.bf16.msra.mxu0 %v3106
    %3495 = vmatpush.bf16.msra.mxu0 %v3099
    %3496 = vmatpush.bf16.msra.mxu0 %v3092
    %3497 = vmatpush.bf16.msra.mxu0 %v3085
    %3498 = vmatpush.bf16.msra.mxu0 %v3078
    %3499 = vmatmul.bf16.gmra.mxu0 %v1987
    %v3500 = vpop.f32.mrf.mxu0
    %v3501 = vadd.f32 %v3488, %v3500
    %v3502 = vpop.f32.mrf.mxu0
    %3503 = vdwg.mxu0
    %3504 = vmatpush.bf16.msra.mxu0 %v3183
    %3505 = vmatpush.bf16.msra.mxu0 %v3176
    %3506 = vmatpush.bf16.msra.mxu0 %v3169
    %3507 = vmatpush.bf16.msra.mxu0 %v3162
    %3508 = vmatpush.bf16.msra.mxu0 %v3155
    %3509 = vmatpush.bf16.msra.mxu0 %v3148
    %3510 = vmatpush.bf16.msra.mxu0 %v3141
    %3511 = vmatpush.bf16.msra.mxu0 %v3134
    %3512 = vmatmul.bf16.gmra.mxu0 %v1988
    %v3513 = vpop.f32.mrf.mxu0
    %v3514 = vadd.f32 %v3501, %v3513
    %v3515 = vpop.f32.mrf.mxu0
    %3516 = vdwg.mxu0
    %3517 = vmatpush.bf16.msra.mxu0 %v3016
    %3518 = vmatpush.bf16.msra.mxu0 %v3009
    %3519 = vmatpush.bf16.msra.mxu0 %v3002
    %3520 = vmatpush.bf16.msra.mxu0 %v2995
    %3521 = vmatpush.bf16.msra.mxu0 %v2988
    %3522 = vmatpush.bf16.msra.mxu0 %v2981
    %3523 = vmatpush.bf16.msra.mxu0 %v2974
    %3524 = vmatpush.bf16.msra.mxu0 %v2967
    %3525 = vmatmul.bf16.gmra.mxu0 %v1985
    %v3526 = vpop.f32.mrf.mxu0
    %v3527 = vadd.f32 %v2249, %v3526
    %v3528 = vpop.f32.mrf.mxu0
    %3529 = vdwg.mxu0
    %3530 = vmatpush.bf16.msra.mxu0 %v3072
    %3531 = vmatpush.bf16.msra.mxu0 %v3065
    %3532 = vmatpush.bf16.msra.mxu0 %v3058
    %3533 = vmatpush.bf16.msra.mxu0 %v3051
    %3534 = vmatpush.bf16.msra.mxu0 %v3044
    %3535 = vmatpush.bf16.msra.mxu0 %v3037
    %3536 = vmatpush.bf16.msra.mxu0 %v3030
    %3537 = vmatpush.bf16.msra.mxu0 %v3023
    %3538 = vmatmul.bf16.gmra.mxu0 %v1986
    %v3539 = vpop.f32.mrf.mxu0
    %v3540 = vadd.f32 %v3527, %v3539
    %v3541 = vpop.f32.mrf.mxu0
    %3542 = vdwg.mxu0
    %3543 = vmatpush.bf16.msra.mxu0 %v3128
    %3544 = vmatpush.bf16.msra.mxu0 %v3121
    %3545 = vmatpush.bf16.msra.mxu0 %v3114
    %3546 = vmatpush.bf16.msra.mxu0 %v3107
    %3547 = vmatpush.bf16.msra.mxu0 %v3100
    %3548 = vmatpush.bf16.msra.mxu0 %v3093
    %3549 = vmatpush.bf16.msra.mxu0 %v3086
    %3550 = vmatpush.bf16.msra.mxu0 %v3079
    %3551 = vmatmul.bf16.gmra.mxu0 %v1987
    %v3552 = vpop.f32.mrf.mxu0
    %v3553 = vadd.f32 %v3540, %v3552
    %v3554 = vpop.f32.mrf.mxu0
    %3555 = vdwg.mxu0
    %3556 = vmatpush.bf16.msra.mxu0 %v3184
    %3557 = vmatpush.bf16.msra.mxu0 %v3177
    %3558 = vmatpush.bf16.msra.mxu0 %v3170
    %3559 = vmatpush.bf16.msra.mxu0 %v3163
    %3560 = vmatpush.bf16.msra.mxu0 %v3156
    %3561 = vmatpush.bf16.msra.mxu0 %v3149
    %3562 = vmatpush.bf16.msra.mxu0 %v3142
    %3563 = vmatpush.bf16.msra.mxu0 %v3135
    %3564 = vmatmul.bf16.gmra.mxu0 %v1988
    %v3565 = vpop.f32.mrf.mxu0
    %v3566 = vadd.f32 %v3553, %v3565
    %v3567 = vpop.f32.mrf.mxu0
    %3568 = vdwg.mxu0
    %3569 = vmatpush.bf16.msra.mxu0 %v3017
    %3570 = vmatpush.bf16.msra.mxu0 %v3010
    %3571 = vmatpush.bf16.msra.mxu0 %v3003
    %3572 = vmatpush.bf16.msra.mxu0 %v2996
    %3573 = vmatpush.bf16.msra.mxu0 %v2989
    %3574 = vmatpush.bf16.msra.mxu0 %v2982
    %3575 = vmatpush.bf16.msra.mxu0 %v2975
    %3576 = vmatpush.bf16.msra.mxu0 %v2968
    %3577 = vmatmul.bf16.gmra.mxu0 %v1985
    %v3578 = vpop.f32.mrf.mxu0
    %v3579 = vadd.f32 %v2250, %v3578
    %v3580 = vpop.f32.mrf.mxu0
    %3581 = vdwg.mxu0
    %3582 = vmatpush.bf16.msra.mxu0 %v3073
    %3583 = vmatpush.bf16.msra.mxu0 %v3066
    %3584 = vmatpush.bf16.msra.mxu0 %v3059
    %3585 = vmatpush.bf16.msra.mxu0 %v3052
    %3586 = vmatpush.bf16.msra.mxu0 %v3045
    %3587 = vmatpush.bf16.msra.mxu0 %v3038
    %3588 = vmatpush.bf16.msra.mxu0 %v3031
    %3589 = vmatpush.bf16.msra.mxu0 %v3024
    %3590 = vmatmul.bf16.gmra.mxu0 %v1986
    %v3591 = vpop.f32.mrf.mxu0
    %v3592 = vadd.f32 %v3579, %v3591
    %v3593 = vpop.f32.mrf.mxu0
    %3594 = vdwg.mxu0
    %3595 = vmatpush.bf16.msra.mxu0 %v3129
    %3596 = vmatpush.bf16.msra.mxu0 %v3122
    %3597 = vmatpush.bf16.msra.mxu0 %v3115
    %3598 = vmatpush.bf16.msra.mxu0 %v3108
    %3599 = vmatpush.bf16.msra.mxu0 %v3101
    %3600 = vmatpush.bf16.msra.mxu0 %v3094
    %3601 = vmatpush.bf16.msra.mxu0 %v3087
    %3602 = vmatpush.bf16.msra.mxu0 %v3080
    %3603 = vmatmul.bf16.gmra.mxu0 %v1987
    %v3604 = vpop.f32.mrf.mxu0
    %v3605 = vadd.f32 %v3592, %v3604
    %v3606 = vpop.f32.mrf.mxu0
    %3607 = vdwg.mxu0
    %3608 = vmatpush.bf16.msra.mxu0 %v3185
    %3609 = vmatpush.bf16.msra.mxu0 %v3178
    %3610 = vmatpush.bf16.msra.mxu0 %v3171
    %3611 = vmatpush.bf16.msra.mxu0 %v3164
    %3612 = vmatpush.bf16.msra.mxu0 %v3157
    %3613 = vmatpush.bf16.msra.mxu0 %v3150
    %3614 = vmatpush.bf16.msra.mxu0 %v3143
    %3615 = vmatpush.bf16.msra.mxu0 %v3136
    %3616 = vmatmul.bf16.gmra.mxu0 %v1988
    %v3617 = vpop.f32.mrf.mxu0
    %v3618 = vadd.f32 %v3605, %v3617
    %v3619 = vpop.f32.mrf.mxu0
    %3620 = vdwg.mxu0
    %3621 = vmatpush.bf16.msra.mxu0 %v3018
    %3622 = vmatpush.bf16.msra.mxu0 %v3011
    %3623 = vmatpush.bf16.msra.mxu0 %v3004
    %3624 = vmatpush.bf16.msra.mxu0 %v2997
    %3625 = vmatpush.bf16.msra.mxu0 %v2990
    %3626 = vmatpush.bf16.msra.mxu0 %v2983
    %3627 = vmatpush.bf16.msra.mxu0 %v2976
    %3628 = vmatpush.bf16.msra.mxu0 %v2969
    %3629 = vmatmul.bf16.gmra.mxu0 %v1985
    %v3630 = vpop.f32.mrf.mxu0
    %v3631 = vadd.f32 %v2251, %v3630
    %v3632 = vpop.f32.mrf.mxu0
    %3633 = vdwg.mxu0
    %3634 = vmatpush.bf16.msra.mxu0 %v3074
    %3635 = vmatpush.bf16.msra.mxu0 %v3067
    %3636 = vmatpush.bf16.msra.mxu0 %v3060
    %3637 = vmatpush.bf16.msra.mxu0 %v3053
    %3638 = vmatpush.bf16.msra.mxu0 %v3046
    %3639 = vmatpush.bf16.msra.mxu0 %v3039
    %3640 = vmatpush.bf16.msra.mxu0 %v3032
    %3641 = vmatpush.bf16.msra.mxu0 %v3025
    %3642 = vmatmul.bf16.gmra.mxu0 %v1986
    %v3643 = vpop.f32.mrf.mxu0
    %v3644 = vadd.f32 %v3631, %v3643
    %v3645 = vpop.f32.mrf.mxu0
    %3646 = vdwg.mxu0
    %3647 = vmatpush.bf16.msra.mxu0 %v3130
    %3648 = vmatpush.bf16.msra.mxu0 %v3123
    %3649 = vmatpush.bf16.msra.mxu0 %v3116
    %3650 = vmatpush.bf16.msra.mxu0 %v3109
    %3651 = vmatpush.bf16.msra.mxu0 %v3102
    %3652 = vmatpush.bf16.msra.mxu0 %v3095
    %3653 = vmatpush.bf16.msra.mxu0 %v3088
    %3654 = vmatpush.bf16.msra.mxu0 %v3081
    %3655 = vmatmul.bf16.gmra.mxu0 %v1987
    %v3656 = vpop.f32.mrf.mxu0
    %v3657 = vadd.f32 %v3644, %v3656
    %v3658 = vpop.f32.mrf.mxu0
    %3659 = vdwg.mxu0
    %3660 = vmatpush.bf16.msra.mxu0 %v3186
    %3661 = vmatpush.bf16.msra.mxu0 %v3179
    %3662 = vmatpush.bf16.msra.mxu0 %v3172
    %3663 = vmatpush.bf16.msra.mxu0 %v3165
    %3664 = vmatpush.bf16.msra.mxu0 %v3158
    %3665 = vmatpush.bf16.msra.mxu0 %v3151
    %3666 = vmatpush.bf16.msra.mxu0 %v3144
    %3667 = vmatpush.bf16.msra.mxu0 %v3137
    %3668 = vmatmul.bf16.gmra.mxu0 %v1988
    %v3669 = vpop.f32.mrf.mxu0
    %v3670 = vadd.f32 %v3657, %v3669
    %v3671 = vpop.f32.mrf.mxu0
    %3672 = vdwg.mxu0
    %3673 = vmatpush.bf16.msra.mxu0 %v3019
    %3674 = vmatpush.bf16.msra.mxu0 %v3012
    %3675 = vmatpush.bf16.msra.mxu0 %v3005
    %3676 = vmatpush.bf16.msra.mxu0 %v2998
    %3677 = vmatpush.bf16.msra.mxu0 %v2991
    %3678 = vmatpush.bf16.msra.mxu0 %v2984
    %3679 = vmatpush.bf16.msra.mxu0 %v2977
    %3680 = vmatpush.bf16.msra.mxu0 %v2970
    %3681 = vmatmul.bf16.gmra.mxu0 %v1985
    %v3682 = vpop.f32.mrf.mxu0
    %v3683 = vadd.f32 %v2252, %v3682
    %v3684 = vpop.f32.mrf.mxu0
    %3685 = vdwg.mxu0
    %3686 = vmatpush.bf16.msra.mxu0 %v3075
    %3687 = vmatpush.bf16.msra.mxu0 %v3068
    %3688 = vmatpush.bf16.msra.mxu0 %v3061
    %3689 = vmatpush.bf16.msra.mxu0 %v3054
    %3690 = vmatpush.bf16.msra.mxu0 %v3047
    %3691 = vmatpush.bf16.msra.mxu0 %v3040
    %3692 = vmatpush.bf16.msra.mxu0 %v3033
    %3693 = vmatpush.bf16.msra.mxu0 %v3026
    %3694 = vmatmul.bf16.gmra.mxu0 %v1986
    %v3695 = vpop.f32.mrf.mxu0
    %v3696 = vadd.f32 %v3683, %v3695
    %v3697 = vpop.f32.mrf.mxu0
    %3698 = vdwg.mxu0
    %3699 = vmatpush.bf16.msra.mxu0 %v3131
    %3700 = vmatpush.bf16.msra.mxu0 %v3124
    %3701 = vmatpush.bf16.msra.mxu0 %v3117
    %3702 = vmatpush.bf16.msra.mxu0 %v3110
    %3703 = vmatpush.bf16.msra.mxu0 %v3103
    %3704 = vmatpush.bf16.msra.mxu0 %v3096
    %3705 = vmatpush.bf16.msra.mxu0 %v3089
    %3706 = vmatpush.bf16.msra.mxu0 %v3082
    %3707 = vmatmul.bf16.gmra.mxu0 %v1987
    %v3708 = vpop.f32.mrf.mxu0
    %v3709 = vadd.f32 %v3696, %v3708
    %v3710 = vpop.f32.mrf.mxu0
    %3711 = vdwg.mxu0
    %3712 = vmatpush.bf16.msra.mxu0 %v3187
    %3713 = vmatpush.bf16.msra.mxu0 %v3180
    %3714 = vmatpush.bf16.msra.mxu0 %v3173
    %3715 = vmatpush.bf16.msra.mxu0 %v3166
    %3716 = vmatpush.bf16.msra.mxu0 %v3159
    %3717 = vmatpush.bf16.msra.mxu0 %v3152
    %3718 = vmatpush.bf16.msra.mxu0 %v3145
    %3719 = vmatpush.bf16.msra.mxu0 %v3138
    %3720 = vmatmul.bf16.gmra.mxu0 %v1988
    %v3721 = vpop.f32.mrf.mxu0
    %v3722 = vadd.f32 %v3709, %v3721
    %v3723 = vpop.f32.mrf.mxu0
    %3724 = vdwg.mxu0
    %3725 = vmatpush.bf16.msra.mxu0 %v3020
    %3726 = vmatpush.bf16.msra.mxu0 %v3013
    %3727 = vmatpush.bf16.msra.mxu0 %v3006
    %3728 = vmatpush.bf16.msra.mxu0 %v2999
    %3729 = vmatpush.bf16.msra.mxu0 %v2992
    %3730 = vmatpush.bf16.msra.mxu0 %v2985
    %3731 = vmatpush.bf16.msra.mxu0 %v2978
    %3732 = vmatpush.bf16.msra.mxu0 %v2971
    %3733 = vmatmul.bf16.gmra.mxu0 %v1985
    %v3734 = vpop.f32.mrf.mxu0
    %v3735 = vadd.f32 %v2253, %v3734
    %v3736 = vpop.f32.mrf.mxu0
    %3737 = vdwg.mxu0
    %3738 = vmatpush.bf16.msra.mxu0 %v3076
    %3739 = vmatpush.bf16.msra.mxu0 %v3069
    %3740 = vmatpush.bf16.msra.mxu0 %v3062
    %3741 = vmatpush.bf16.msra.mxu0 %v3055
    %3742 = vmatpush.bf16.msra.mxu0 %v3048
    %3743 = vmatpush.bf16.msra.mxu0 %v3041
    %3744 = vmatpush.bf16.msra.mxu0 %v3034
    %3745 = vmatpush.bf16.msra.mxu0 %v3027
    %3746 = vmatmul.bf16.gmra.mxu0 %v1986
    %v3747 = vpop.f32.mrf.mxu0
    %v3748 = vadd.f32 %v3735, %v3747
    %v3749 = vpop.f32.mrf.mxu0
    %3750 = vdwg.mxu0
    %3751 = vmatpush.bf16.msra.mxu0 %v3132
    %3752 = vmatpush.bf16.msra.mxu0 %v3125
    %3753 = vmatpush.bf16.msra.mxu0 %v3118
    %3754 = vmatpush.bf16.msra.mxu0 %v3111
    %3755 = vmatpush.bf16.msra.mxu0 %v3104
    %3756 = vmatpush.bf16.msra.mxu0 %v3097
    %3757 = vmatpush.bf16.msra.mxu0 %v3090
    %3758 = vmatpush.bf16.msra.mxu0 %v3083
    %3759 = vmatmul.bf16.gmra.mxu0 %v1987
    %v3760 = vpop.f32.mrf.mxu0
    %v3761 = vadd.f32 %v3748, %v3760
    %v3762 = vpop.f32.mrf.mxu0
    %3763 = vdwg.mxu0
    %3764 = vmatpush.bf16.msra.mxu0 %v3188
    %3765 = vmatpush.bf16.msra.mxu0 %v3181
    %3766 = vmatpush.bf16.msra.mxu0 %v3174
    %3767 = vmatpush.bf16.msra.mxu0 %v3167
    %3768 = vmatpush.bf16.msra.mxu0 %v3160
    %3769 = vmatpush.bf16.msra.mxu0 %v3153
    %3770 = vmatpush.bf16.msra.mxu0 %v3146
    %3771 = vmatpush.bf16.msra.mxu0 %v3139
    %3772 = vmatmul.bf16.gmra.mxu0 %v1988
    %v3773 = vpop.f32.mrf.mxu0
    %v3774 = vadd.f32 %v3761, %v3773
    %v3775 = vpop.f32.mrf.mxu0
    %3776 = vdwg.mxu0
    %v3777 = vmul.f32 %v3462, 0.5
    %v3778 = vmul.f32 %v3514, 0.5
    %v3779 = vmul.f32 %v3566, 0.5
    %v3780 = vmul.f32 %v3618, 0.5
    %v3781 = vmul.f32 %v3670, 0.5
    %v3782 = vmul.f32 %v3722, 0.5
    %v3783 = vmul.f32 %v3774, 0.5
    %v3784 = vtanh.pop %v3777
    %v3785 = vtanh.pop %v3778
    %v3786 = vtanh.pop %v3779
    %v3787 = vtanh.pop %v3780
    %v3788 = vtanh.pop %v3781
    %v3789 = vtanh.pop %v3782
    %v3790 = vtanh.pop %v3783
    %v3791 = vmul.f32 %v3784, 0.5
    %v3792 = vmul.f32 %v3785, 0.5
    %v3793 = vmul.f32 %v3786, 0.5
    %v3794 = vmul.f32 %v3787, 0.5
    %v3795 = vmul.f32 %v3788, 0.5
    %v3796 = vmul.f32 %v3789, 0.5
    %v3797 = vmul.f32 %v3790, 0.5
    %v3798 = vadd.f32 %v3791, 0.5
    %v3799 = vadd.f32 %v3792, 0.5
    %v3800 = vadd.f32 %v3793, 0.5
    %v3801 = vadd.f32 %v3794, 0.5
    %v3802 = vadd.f32 %v3795, 0.5
    %v3803 = vadd.f32 %v3796, 0.5
    %v3804 = vadd.f32 %v3797, 0.5
    %3805 = vst [vmem:[#allocation2] sm:$0xff] %v3798
    %3806 = vst [vmem:[#allocation2 + $0x8] sm:$0xff] %v3799
    %3807 = vst [vmem:[#allocation2 + $0x10] sm:$0xff] %v3800
    %3808 = vst [vmem:[#allocation2 + $0x18] sm:$0xff] %v3801
    %3809 = vst [vmem:[#allocation2 + $0x20] sm:$0xff] %v3802
    %3810 = vst [vmem:[#allocation2 + $0x28] sm:$0xff] %v3803
    %vm3811 = vcmask 130048
    %3812 = vst.msk [vmem:[#allocation2 + $0x30] sm:$0xff] %vm3811, %v3804
    // Predicated region
    $region22: #{decoder_forward.1} parent=1 // pred_check
      _
    $region23: #{decoder_forward.1} parent=1 // pred_check_branch
      %3814 = sbr.rel (0) target = $region25
    $region24: #{decoder_forward.1} parent=1 // pred_region
      %3816 = vsyncadd [#allocation3], 0
      %s3818 = sshll.u32 [#allocation2], 4
      %s3819 = int_to_ptr.vmem [resolvable:$true] %s3818
      %s3820 = sshll.u32 %s5, 4
      %s3821 = int_to_ptr.hbm [resolvable:$true] %s3820
      %3823 = dma.vmem_to_hbm [thread:$0]  %s3819, 896, %s3821, [#allocation3]
    $region25: #{decoder_forward.1} parent=1 // pred_fallthru
      _
    // Predicated region
    $region26: #{decoder_forward.1} parent=1 // pred_check
      _
    $region27: #{decoder_forward.1} parent=1 // pred_check_branch
      %3825 = sbr.rel (0) target = $region29
    $region28: #{decoder_forward.1} parent=1 // pred_region
      %3827 = dma.done [#allocation3], 896
    $region29: #{decoder_forward.1} parent=1 // pred_fallthru
      _
    %3828 = vsyncpa [#allocation3], 1

</llo_original>
